<compile_context>
chip_gen: v7x
topology: tpu7x:2x2x1
jax: 0.10.0
libtpu: 0.0.40
codegen_flags: <defaults>
</compile_context>

<pallas_src>
import jax
import jax.numpy as jnp
from jax.experimental import pallas as pl
from jax.experimental.pallas import tpu as pltpu

INPUT_DIM = 1
HIDDEN_DIM = 32
NUM_LAYERS = 2
OUTPUT_DIM = 1


def lstm_kernel(
    x_ref,       # (T, B, D_in)  VMEM
    wih0_ref,    # (D_in, 4H)    layer-0 input weights (D_in == 1)
    whh0_ref,    # (H, 4H)       layer-0 hidden weights
    b0_ref,      # (1, 4H)       layer-0 bias (b_ih + b_hh)
    wcat1_ref,   # (2H, 4H)      layer-1 [w_ih1; w_hh1] fused
    b1_ref,      # (1, 4H)       layer-1 bias (b_ih + b_hh)
    wfc_ref,     # (H, OUT)
    bfc_ref,     # (1, OUT)
    out_ref,     # (B, OUT)
):
    T, B, _ = x_ref.shape
    H = whh0_ref.shape[0]

    # ---------- hoisted, non-recurrent work (runs once) ----------
    # Layer-0 input projection for ALL timesteps.  D_in == 1 so this is an
    # outer product -> pure VPU broadcast-multiply, bias folded in.  (T, B, 4H)
    xw0 = x_ref[...] * wih0_ref[...] + b0_ref[...]

    w_hh0 = whh0_ref[...]                               # (H, 4H)
    w_cat1 = wcat1_ref[...]                             # (2H, 4H) = [w_ih1; w_hh1]
    b1 = jnp.broadcast_to(b1_ref[...], (B, 4 * H))      # hoisted broadcast

    def gate_combine(gates, c_prev):
        # Full-width activations over the whole (B, 4H) block (2 EUP issues),
        # then static lane slices select the i/f/g/o gates.
        sig = jax.nn.sigmoid(gates)
        th = jnp.tanh(gates)
        i = sig[:, 0 * H:1 * H]
        f = sig[:, 1 * H:2 * H]
        g = th[:, 2 * H:3 * H]
        o = sig[:, 3 * H:4 * H]
        # c_prev is None for the very first step: the initial cell state is
        # exactly zero, so f * c_prev drops out.
        c_new = i * g if c_prev is None else f * c_prev + i * g
        h_new = o * jnp.tanh(c_new)
        return h_new, c_new

    # ---------- t = 0: initial h/c are zero, so hh matmuls vanish ----------
    # Layer 0: gates are just the precomputed input projection + bias.
    h1, c1 = gate_combine(xw0[0], None)
    # Layer 1: h2_prev == 0, so only the ih half of the fused weight is needed
    # (static sublane slice of the already-loaded (2H,4H) block -> no reload).
    gates1 = jnp.dot(h1, w_cat1[:H], preferred_element_type=jnp.float32) + b1
    h2, c2 = gate_combine(gates1, None)

    # ---------- serial recurrence, fully unrolled (T is small & static) ----------
    for t in range(1, T):
        # Layer 0: input term precomputed -> one MXU matmul on the serial chain.
        gates0 = xw0[t] + jnp.dot(h1, w_hh0, preferred_element_type=jnp.float32)
        h1, c1 = gate_combine(gates0, c1)

        # Layer 1: ih + hh fused into a single (B,2H)@(2H,4H) matmul.  This op
        # only depends on h1[t] / h2[t-1], so the scheduler can pipeline it with
        # the next step's layer-0 matmul (both hang off h1[t]).
        hcat = jnp.concatenate([h1, h2], axis=-1)        # (B, 2H), XLU lane-concat
        gates1 = jnp.dot(hcat, w_cat1, preferred_element_type=jnp.float32) + b1
        h2, c2 = gate_combine(gates1, c2)

    # Final Linear on the last timestep's top-layer hidden state.
    out_ref[...] = (
        jnp.dot(h2, wfc_ref[...], preferred_element_type=jnp.float32) + bfc_ref[...]
    )


def lstm_forward(x, params):
    """x: (B, T, D_in) float32, batch-first. Returns (B, OUTPUT_DIM)."""
    B, T, _ = x.shape
    x_tbd = jnp.transpose(x, (1, 0, 2))  # (T, B, D_in): time on the leading axis
    vmem = pl.BlockSpec(memory_space=pltpu.MemorySpace.VMEM)
    out = pl.pallas_call(
        lstm_kernel,
        out_shape=jax.ShapeDtypeStruct((B, OUTPUT_DIM), jnp.float32),
        in_specs=[vmem] * (1 + len(params)),
        out_specs=vmem,
    )(x_tbd, *params)
    return out


def init_params(key):
    """Deterministic PyTorch-style uniform(-1/sqrt(H), 1/sqrt(H)) init, pre-packed."""
    H, Din, Out = HIDDEN_DIM, INPUT_DIM, OUTPUT_DIM
    bound = 1.0 / jnp.sqrt(jnp.float32(H))
    keys = jax.random.split(key, 10)

    def u(k, shape):
        return jax.random.uniform(k, shape, jnp.float32, -bound, bound)

    # PyTorch-layout weights, then pre-transposed / fused for the kernel.
    w_ih0 = u(keys[0], (4 * H, Din))
    w_hh0 = u(keys[1], (4 * H, H))
    b_ih0 = u(keys[2], (4 * H,))
    b_hh0 = u(keys[3], (4 * H,))
    w_ih1 = u(keys[4], (4 * H, H))
    w_hh1 = u(keys[5], (4 * H, H))
    b_ih1 = u(keys[6], (4 * H,))
    b_hh1 = u(keys[7], (4 * H,))
    w_fc = u(keys[8], (Out, H))
    b_fc = u(keys[9], (Out,))

    params = (
        w_ih0.T,                                        # (Din, 4H)
        w_hh0.T,                                        # (H, 4H)
        (b_ih0 + b_hh0)[None, :],                       # (1, 4H)
        jnp.concatenate([w_ih1.T, w_hh1.T], axis=0),    # (2H, 4H) fused [ih; hh]
        (b_ih1 + b_hh1)[None, :],                       # (1, 4H)
        w_fc.T,                                         # (H, Out)
        b_fc[None, :],                                  # (1, Out)
    )
    return params


def lstm_reference(x, params):
    """Pure-JAX reference with identical semantics (for correctness check)."""
    w_ih0, w_hh0, b0, w_cat1, b1, w_fc, b_fc = params
    H = HIDDEN_DIM
    w_ih1, w_hh1 = w_cat1[:H], w_cat1[H:]
    B, T, _ = x.shape

    def cell(x_t, h, c, w_ih, w_hh, b):
        gates = x_t @ w_ih + h @ w_hh + b
        i = jax.nn.sigmoid(gates[:, 0 * H:1 * H])
        f = jax.nn.sigmoid(gates[:, 1 * H:2 * H])
        g = jnp.tanh(gates[:, 2 * H:3 * H])
        o = jax.nn.sigmoid(gates[:, 3 * H:4 * H])
        c_new = f * c + i * g
        h_new = o * jnp.tanh(c_new)
        return h_new, c_new

    h1 = c1 = h2 = c2 = jnp.zeros((B, H), jnp.float32)
    for t in range(T):
        h1, c1 = cell(x[:, t, :], h1, c1, w_ih0, w_hh0, b0)
        h2, c2 = cell(h1, h2, c2, w_ih1, w_hh1, b1)
    return h2 @ w_fc + b_fc


if __name__ == "__main__":
    key = jax.random.PRNGKey(0)
    k_param, k_x = jax.random.split(key)

    B, T = 2, 8  # batch=2, seq=8, input_dim=1 (as the module implies)
    x = jax.random.normal(k_x, (B, T, INPUT_DIM), jnp.float32)
    params = init_params(k_param)

    out = jax.block_until_ready(lstm_forward(x, params))
    ref = lstm_reference(x, params)

    assert out.shape == (B, OUTPUT_DIM)
    assert jnp.allclose(out, ref, atol=1e-5, rtol=1e-5), (out, ref)

    print("KERNEL_OK")
</pallas_src>

<mosaic_0001>
module attributes {stable_mosaic.version = 11 : i64} {
  func.func @lstm_kernel(%arg0: memref<8x2x1xf32, #tpu.memory_space<vmem>>, %arg1: memref<1x128xf32, #tpu.memory_space<vmem>>, %arg2: memref<32x128xf32, #tpu.memory_space<vmem>>, %arg3: memref<1x128xf32, #tpu.memory_space<vmem>>, %arg4: memref<64x128xf32, #tpu.memory_space<vmem>>, %arg5: memref<1x128xf32, #tpu.memory_space<vmem>>, %arg6: memref<32x1xf32, #tpu.memory_space<vmem>>, %arg7: memref<1x1xf32, #tpu.memory_space<vmem>>, %arg8: memref<2x1xf32, #tpu.memory_space<vmem>>) attributes {dimension_semantics = [], scalar_prefetch = 0 : i64, scratch_operands = 0 : i64, tpu.core_type = #tpu.core_type<tc>} {
    %c0 = arith.constant 0 : index
    %c0_0 = arith.constant 0 : index
    %c0_1 = arith.constant 0 : index
    %0 = vector.load %arg0[%c0, %c0_0, %c0_1] : memref<8x2x1xf32, #tpu.memory_space<vmem>>, vector<8x2x1xf32>
    %c0_2 = arith.constant 0 : index
    %c0_3 = arith.constant 0 : index
    %1 = vector.load %arg1[%c0_2, %c0_3] : memref<1x128xf32, #tpu.memory_space<vmem>>, vector<1x128xf32>
    %2 = vector.shape_cast %1 : vector<1x128xf32> to vector<1x1x128xf32>
    %3 = vector.broadcast %0 : vector<8x2x1xf32> to vector<8x2x128xf32>
    %4 = vector.broadcast %2 : vector<1x1x128xf32> to vector<8x2x128xf32>
    %5 = arith.mulf %3, %4 : vector<8x2x128xf32>
    %c0_4 = arith.constant 0 : index
    %c0_5 = arith.constant 0 : index
    %6 = vector.load %arg3[%c0_4, %c0_5] : memref<1x128xf32, #tpu.memory_space<vmem>>, vector<1x128xf32>
    %7 = vector.shape_cast %6 : vector<1x128xf32> to vector<1x1x128xf32>
    %8 = vector.broadcast %7 : vector<1x1x128xf32> to vector<8x2x128xf32>
    %9 = arith.addf %5, %8 : vector<8x2x128xf32>
    %c0_6 = arith.constant 0 : index
    %c0_7 = arith.constant 0 : index
    %10 = vector.load %arg2[%c0_6, %c0_7] : memref<32x128xf32, #tpu.memory_space<vmem>>, vector<32x128xf32>
    %c0_8 = arith.constant 0 : index
    %c0_9 = arith.constant 0 : index
    %11 = vector.load %arg4[%c0_8, %c0_9] : memref<64x128xf32, #tpu.memory_space<vmem>>, vector<64x128xf32>
    %c0_10 = arith.constant 0 : index
    %c0_11 = arith.constant 0 : index
    %12 = vector.load %arg5[%c0_10, %c0_11] : memref<1x128xf32, #tpu.memory_space<vmem>>, vector<1x128xf32>
    %13 = vector.shape_cast %12 : vector<1x128xf32> to vector<1x128xf32>
    %14 = vector.broadcast %13 : vector<1x128xf32> to vector<2x128xf32>
    %15 = vector.extract_strided_slice %9 {offsets = [0, 0, 0], sizes = [1, 2, 128], strides = [1, 1, 1]} : vector<8x2x128xf32> to vector<1x2x128xf32>
    %16 = vector.shape_cast %15 : vector<1x2x128xf32> to vector<2x128xf32>
    %17 = arith.negf %16 : vector<2x128xf32>
    %18 = math.exp %17 : vector<2x128xf32>
    %cst = arith.constant 1.000000e+00 : f32
    %19 = vector.broadcast %cst : f32 to vector<2x128xf32>
    %20 = arith.addf %19, %18 : vector<2x128xf32>
    %21 = arith.divf %19, %20 : vector<2x128xf32>
    %22 = math.tanh %16 : vector<2x128xf32>
    %23 = vector.extract_strided_slice %21 {offsets = [0, 0], sizes = [2, 32], strides = [1, 1]} : vector<2x128xf32> to vector<2x32xf32>
    %24 = vector.extract_strided_slice %22 {offsets = [0, 64], sizes = [2, 32], strides = [1, 1]} : vector<2x128xf32> to vector<2x32xf32>
    %25 = vector.extract_strided_slice %21 {offsets = [0, 96], sizes = [2, 32], strides = [1, 1]} : vector<2x128xf32> to vector<2x32xf32>
    %26 = arith.mulf %23, %24 : vector<2x32xf32>
    %27 = math.tanh %26 : vector<2x32xf32>
    %28 = arith.mulf %25, %27 : vector<2x32xf32>
    %29 = vector.extract_strided_slice %11 {offsets = [0, 0], sizes = [32, 128], strides = [1, 1]} : vector<64x128xf32> to vector<32x128xf32>
    %cst_12 = arith.constant dense<0.000000e+00> : vector<2x128xf32>
    %30 = tpu.matmul %28, %29, %cst_12 {dimension_numbers = #tpu.dot_dimension_numbers<[1], [0], [0], [1], [0, 0, 1, 1], [], []>} : vector<2x32xf32>, vector<32x128xf32>, vector<2x128xf32> -> vector<2x128xf32>
    %31 = arith.addf %30, %14 : vector<2x128xf32>
    %32 = arith.negf %31 : vector<2x128xf32>
    %33 = math.exp %32 : vector<2x128xf32>
    %cst_13 = arith.constant 1.000000e+00 : f32
    %34 = vector.broadcast %cst_13 : f32 to vector<2x128xf32>
    %35 = arith.addf %34, %33 : vector<2x128xf32>
    %36 = arith.divf %34, %35 : vector<2x128xf32>
    %37 = math.tanh %31 : vector<2x128xf32>
    %38 = vector.extract_strided_slice %36 {offsets = [0, 0], sizes = [2, 32], strides = [1, 1]} : vector<2x128xf32> to vector<2x32xf32>
    %39 = vector.extract_strided_slice %37 {offsets = [0, 64], sizes = [2, 32], strides = [1, 1]} : vector<2x128xf32> to vector<2x32xf32>
    %40 = vector.extract_strided_slice %36 {offsets = [0, 96], sizes = [2, 32], strides = [1, 1]} : vector<2x128xf32> to vector<2x32xf32>
    %41 = arith.mulf %38, %39 : vector<2x32xf32>
    %42 = math.tanh %41 : vector<2x32xf32>
    %43 = arith.mulf %40, %42 : vector<2x32xf32>
    %44 = vector.extract_strided_slice %9 {offsets = [1, 0, 0], sizes = [1, 2, 128], strides = [1, 1, 1]} : vector<8x2x128xf32> to vector<1x2x128xf32>
    %45 = vector.shape_cast %44 : vector<1x2x128xf32> to vector<2x128xf32>
    %cst_14 = arith.constant dense<0.000000e+00> : vector<2x128xf32>
    %46 = tpu.matmul %28, %10, %cst_14 {dimension_numbers = #tpu.dot_dimension_numbers<[1], [0], [0], [1], [0, 0, 1, 1], [], []>} : vector<2x32xf32>, vector<32x128xf32>, vector<2x128xf32> -> vector<2x128xf32>
    %47 = arith.addf %45, %46 : vector<2x128xf32>
    %48 = arith.negf %47 : vector<2x128xf32>
    %49 = math.exp %48 : vector<2x128xf32>
    %cst_15 = arith.constant 1.000000e+00 : f32
    %50 = vector.broadcast %cst_15 : f32 to vector<2x128xf32>
    %51 = arith.addf %50, %49 : vector<2x128xf32>
    %52 = arith.divf %50, %51 : vector<2x128xf32>
    %53 = math.tanh %47 : vector<2x128xf32>
    %54 = vector.extract_strided_slice %52 {offsets = [0, 0], sizes = [2, 32], strides = [1, 1]} : vector<2x128xf32> to vector<2x32xf32>
    %55 = vector.extract_strided_slice %52 {offsets = [0, 32], sizes = [2, 32], strides = [1, 1]} : vector<2x128xf32> to vector<2x32xf32>
    %56 = vector.extract_strided_slice %53 {offsets = [0, 64], sizes = [2, 32], strides = [1, 1]} : vector<2x128xf32> to vector<2x32xf32>
    %57 = vector.extract_strided_slice %52 {offsets = [0, 96], sizes = [2, 32], strides = [1, 1]} : vector<2x128xf32> to vector<2x32xf32>
    %58 = arith.mulf %55, %26 : vector<2x32xf32>
    %59 = arith.mulf %54, %56 : vector<2x32xf32>
    %60 = arith.addf %58, %59 : vector<2x32xf32>
    %61 = math.tanh %60 : vector<2x32xf32>
    %62 = arith.mulf %57, %61 : vector<2x32xf32>
    %63 = tpu.concatenate %62, %43 in 1 : vector<2x32xf32>, vector<2x32xf32> -> vector<2x64xf32>
    %cst_16 = arith.constant dense<0.000000e+00> : vector<2x128xf32>
    %64 = tpu.matmul %63, %11, %cst_16 {dimension_numbers = #tpu.dot_dimension_numbers<[1], [0], [0], [1], [0, 0, 1, 1], [], []>} : vector<2x64xf32>, vector<64x128xf32>, vector<2x128xf32> -> vector<2x128xf32>
    %65 = arith.addf %64, %14 : vector<2x128xf32>
    %66 = arith.negf %65 : vector<2x128xf32>
    %67 = math.exp %66 : vector<2x128xf32>
    %cst_17 = arith.constant 1.000000e+00 : f32
    %68 = vector.broadcast %cst_17 : f32 to vector<2x128xf32>
    %69 = arith.addf %68, %67 : vector<2x128xf32>
    %70 = arith.divf %68, %69 : vector<2x128xf32>
    %71 = math.tanh %65 : vector<2x128xf32>
    %72 = vector.extract_strided_slice %70 {offsets = [0, 0], sizes = [2, 32], strides = [1, 1]} : vector<2x128xf32> to vector<2x32xf32>
    %73 = vector.extract_strided_slice %70 {offsets = [0, 32], sizes = [2, 32], strides = [1, 1]} : vector<2x128xf32> to vector<2x32xf32>
    %74 = vector.extract_strided_slice %71 {offsets = [0, 64], sizes = [2, 32], strides = [1, 1]} : vector<2x128xf32> to vector<2x32xf32>
    %75 = vector.extract_strided_slice %70 {offsets = [0, 96], sizes = [2, 32], strides = [1, 1]} : vector<2x128xf32> to vector<2x32xf32>
    %76 = arith.mulf %73, %41 : vector<2x32xf32>
    %77 = arith.mulf %72, %74 : vector<2x32xf32>
    %78 = arith.addf %76, %77 : vector<2x32xf32>
    %79 = math.tanh %78 : vector<2x32xf32>
    %80 = arith.mulf %75, %79 : vector<2x32xf32>
    %81 = vector.extract_strided_slice %9 {offsets = [2, 0, 0], sizes = [1, 2, 128], strides = [1, 1, 1]} : vector<8x2x128xf32> to vector<1x2x128xf32>
    %82 = vector.shape_cast %81 : vector<1x2x128xf32> to vector<2x128xf32>
    %cst_18 = arith.constant dense<0.000000e+00> : vector<2x128xf32>
    %83 = tpu.matmul %62, %10, %cst_18 {dimension_numbers = #tpu.dot_dimension_numbers<[1], [0], [0], [1], [0, 0, 1, 1], [], []>} : vector<2x32xf32>, vector<32x128xf32>, vector<2x128xf32> -> vector<2x128xf32>
    %84 = arith.addf %82, %83 : vector<2x128xf32>
    %85 = arith.negf %84 : vector<2x128xf32>
    %86 = math.exp %85 : vector<2x128xf32>
    %cst_19 = arith.constant 1.000000e+00 : f32
    %87 = vector.broadcast %cst_19 : f32 to vector<2x128xf32>
    %88 = arith.addf %87, %86 : vector<2x128xf32>
    %89 = arith.divf %87, %88 : vector<2x128xf32>
    %90 = math.tanh %84 : vector<2x128xf32>
    %91 = vector.extract_strided_slice %89 {offsets = [0, 0], sizes = [2, 32], strides = [1, 1]} : vector<2x128xf32> to vector<2x32xf32>
    %92 = vector.extract_strided_slice %89 {offsets = [0, 32], sizes = [2, 32], strides = [1, 1]} : vector<2x128xf32> to vector<2x32xf32>
    %93 = vector.extract_strided_slice %90 {offsets = [0, 64], sizes = [2, 32], strides = [1, 1]} : vector<2x128xf32> to vector<2x32xf32>
    %94 = vector.extract_strided_slice %89 {offsets = [0, 96], sizes = [2, 32], strides = [1, 1]} : vector<2x128xf32> to vector<2x32xf32>
    %95 = arith.mulf %92, %60 : vector<2x32xf32>
    %96 = arith.mulf %91, %93 : vector<2x32xf32>
    %97 = arith.addf %95, %96 : vector<2x32xf32>
    %98 = math.tanh %97 : vector<2x32xf32>
    %99 = arith.mulf %94, %98 : vector<2x32xf32>
    %100 = tpu.concatenate %99, %80 in 1 : vector<2x32xf32>, vector<2x32xf32> -> vector<2x64xf32>
    %cst_20 = arith.constant dense<0.000000e+00> : vector<2x128xf32>
    %101 = tpu.matmul %100, %11, %cst_20 {dimension_numbers = #tpu.dot_dimension_numbers<[1], [0], [0], [1], [0, 0, 1, 1], [], []>} : vector<2x64xf32>, vector<64x128xf32>, vector<2x128xf32> -> vector<2x128xf32>
    %102 = arith.addf %101, %14 : vector<2x128xf32>
    %103 = arith.negf %102 : vector<2x128xf32>
    %104 = math.exp %103 : vector<2x128xf32>
    %cst_21 = arith.constant 1.000000e+00 : f32
    %105 = vector.broadcast %cst_21 : f32 to vector<2x128xf32>
    %106 = arith.addf %105, %104 : vector<2x128xf32>
    %107 = arith.divf %105, %106 : vector<2x128xf32>
    %108 = math.tanh %102 : vector<2x128xf32>
    %109 = vector.extract_strided_slice %107 {offsets = [0, 0], sizes = [2, 32], strides = [1, 1]} : vector<2x128xf32> to vector<2x32xf32>
    %110 = vector.extract_strided_slice %107 {offsets = [0, 32], sizes = [2, 32], strides = [1, 1]} : vector<2x128xf32> to vector<2x32xf32>
    %111 = vector.extract_strided_slice %108 {offsets = [0, 64], sizes = [2, 32], strides = [1, 1]} : vector<2x128xf32> to vector<2x32xf32>
    %112 = vector.extract_strided_slice %107 {offsets = [0, 96], sizes = [2, 32], strides = [1, 1]} : vector<2x128xf32> to vector<2x32xf32>
    %113 = arith.mulf %110, %78 : vector<2x32xf32>
    %114 = arith.mulf %109, %111 : vector<2x32xf32>
    %115 = arith.addf %113, %114 : vector<2x32xf32>
    %116 = math.tanh %115 : vector<2x32xf32>
    %117 = arith.mulf %112, %116 : vector<2x32xf32>
    %118 = vector.extract_strided_slice %9 {offsets = [3, 0, 0], sizes = [1, 2, 128], strides = [1, 1, 1]} : vector<8x2x128xf32> to vector<1x2x128xf32>
    %119 = vector.shape_cast %118 : vector<1x2x128xf32> to vector<2x128xf32>
    %cst_22 = arith.constant dense<0.000000e+00> : vector<2x128xf32>
    %120 = tpu.matmul %99, %10, %cst_22 {dimension_numbers = #tpu.dot_dimension_numbers<[1], [0], [0], [1], [0, 0, 1, 1], [], []>} : vector<2x32xf32>, vector<32x128xf32>, vector<2x128xf32> -> vector<2x128xf32>
    %121 = arith.addf %119, %120 : vector<2x128xf32>
    %122 = arith.negf %121 : vector<2x128xf32>
    %123 = math.exp %122 : vector<2x128xf32>
    %cst_23 = arith.constant 1.000000e+00 : f32
    %124 = vector.broadcast %cst_23 : f32 to vector<2x128xf32>
    %125 = arith.addf %124, %123 : vector<2x128xf32>
    %126 = arith.divf %124, %125 : vector<2x128xf32>
    %127 = math.tanh %121 : vector<2x128xf32>
    %128 = vector.extract_strided_slice %126 {offsets = [0, 0], sizes = [2, 32], strides = [1, 1]} : vector<2x128xf32> to vector<2x32xf32>
    %129 = vector.extract_strided_slice %126 {offsets = [0, 32], sizes = [2, 32], strides = [1, 1]} : vector<2x128xf32> to vector<2x32xf32>
    %130 = vector.extract_strided_slice %127 {offsets = [0, 64], sizes = [2, 32], strides = [1, 1]} : vector<2x128xf32> to vector<2x32xf32>
    %131 = vector.extract_strided_slice %126 {offsets = [0, 96], sizes = [2, 32], strides = [1, 1]} : vector<2x128xf32> to vector<2x32xf32>
    %132 = arith.mulf %129, %97 : vector<2x32xf32>
    %133 = arith.mulf %128, %130 : vector<2x32xf32>
    %134 = arith.addf %132, %133 : vector<2x32xf32>
    %135 = math.tanh %134 : vector<2x32xf32>
    %136 = arith.mulf %131, %135 : vector<2x32xf32>
    %137 = tpu.concatenate %136, %117 in 1 : vector<2x32xf32>, vector<2x32xf32> -> vector<2x64xf32>
    %cst_24 = arith.constant dense<0.000000e+00> : vector<2x128xf32>
    %138 = tpu.matmul %137, %11, %cst_24 {dimension_numbers = #tpu.dot_dimension_numbers<[1], [0], [0], [1], [0, 0, 1, 1], [], []>} : vector<2x64xf32>, vector<64x128xf32>, vector<2x128xf32> -> vector<2x128xf32>
    %139 = arith.addf %138, %14 : vector<2x128xf32>
    %140 = arith.negf %139 : vector<2x128xf32>
    %141 = math.exp %140 : vector<2x128xf32>
    %cst_25 = arith.constant 1.000000e+00 : f32
    %142 = vector.broadcast %cst_25 : f32 to vector<2x128xf32>
    %143 = arith.addf %142, %141 : vector<2x128xf32>
    %144 = arith.divf %142, %143 : vector<2x128xf32>
    %145 = math.tanh %139 : vector<2x128xf32>
    %146 = vector.extract_strided_slice %144 {offsets = [0, 0], sizes = [2, 32], strides = [1, 1]} : vector<2x128xf32> to vector<2x32xf32>
    %147 = vector.extract_strided_slice %144 {offsets = [0, 32], sizes = [2, 32], strides = [1, 1]} : vector<2x128xf32> to vector<2x32xf32>
    %148 = vector.extract_strided_slice %145 {offsets = [0, 64], sizes = [2, 32], strides = [1, 1]} : vector<2x128xf32> to vector<2x32xf32>
    %149 = vector.extract_strided_slice %144 {offsets = [0, 96], sizes = [2, 32], strides = [1, 1]} : vector<2x128xf32> to vector<2x32xf32>
    %150 = arith.mulf %147, %115 : vector<2x32xf32>
    %151 = arith.mulf %146, %148 : vector<2x32xf32>
    %152 = arith.addf %150, %151 : vector<2x32xf32>
    %153 = math.tanh %152 : vector<2x32xf32>
    %154 = arith.mulf %149, %153 : vector<2x32xf32>
    %155 = vector.extract_strided_slice %9 {offsets = [4, 0, 0], sizes = [1, 2, 128], strides = [1, 1, 1]} : vector<8x2x128xf32> to vector<1x2x128xf32>
    %156 = vector.shape_cast %155 : vector<1x2x128xf32> to vector<2x128xf32>
    %cst_26 = arith.constant dense<0.000000e+00> : vector<2x128xf32>
    %157 = tpu.matmul %136, %10, %cst_26 {dimension_numbers = #tpu.dot_dimension_numbers<[1], [0], [0], [1], [0, 0, 1, 1], [], []>} : vector<2x32xf32>, vector<32x128xf32>, vector<2x128xf32> -> vector<2x128xf32>
    %158 = arith.addf %156, %157 : vector<2x128xf32>
    %159 = arith.negf %158 : vector<2x128xf32>
    %160 = math.exp %159 : vector<2x128xf32>
    %cst_27 = arith.constant 1.000000e+00 : f32
    %161 = vector.broadcast %cst_27 : f32 to vector<2x128xf32>
    %162 = arith.addf %161, %160 : vector<2x128xf32>
    %163 = arith.divf %161, %162 : vector<2x128xf32>
    %164 = math.tanh %158 : vector<2x128xf32>
    %165 = vector.extract_strided_slice %163 {offsets = [0, 0], sizes = [2, 32], strides = [1, 1]} : vector<2x128xf32> to vector<2x32xf32>
    %166 = vector.extract_strided_slice %163 {offsets = [0, 32], sizes = [2, 32], strides = [1, 1]} : vector<2x128xf32> to vector<2x32xf32>
    %167 = vector.extract_strided_slice %164 {offsets = [0, 64], sizes = [2, 32], strides = [1, 1]} : vector<2x128xf32> to vector<2x32xf32>
    %168 = vector.extract_strided_slice %163 {offsets = [0, 96], sizes = [2, 32], strides = [1, 1]} : vector<2x128xf32> to vector<2x32xf32>
    %169 = arith.mulf %166, %134 : vector<2x32xf32>
    %170 = arith.mulf %165, %167 : vector<2x32xf32>
    %171 = arith.addf %169, %170 : vector<2x32xf32>
    %172 = math.tanh %171 : vector<2x32xf32>
    %173 = arith.mulf %168, %172 : vector<2x32xf32>
    %174 = tpu.concatenate %173, %154 in 1 : vector<2x32xf32>, vector<2x32xf32> -> vector<2x64xf32>
    %cst_28 = arith.constant dense<0.000000e+00> : vector<2x128xf32>
    %175 = tpu.matmul %174, %11, %cst_28 {dimension_numbers = #tpu.dot_dimension_numbers<[1], [0], [0], [1], [0, 0, 1, 1], [], []>} : vector<2x64xf32>, vector<64x128xf32>, vector<2x128xf32> -> vector<2x128xf32>
    %176 = arith.addf %175, %14 : vector<2x128xf32>
    %177 = arith.negf %176 : vector<2x128xf32>
    %178 = math.exp %177 : vector<2x128xf32>
    %cst_29 = arith.constant 1.000000e+00 : f32
    %179 = vector.broadcast %cst_29 : f32 to vector<2x128xf32>
    %180 = arith.addf %179, %178 : vector<2x128xf32>
    %181 = arith.divf %179, %180 : vector<2x128xf32>
    %182 = math.tanh %176 : vector<2x128xf32>
    %183 = vector.extract_strided_slice %181 {offsets = [0, 0], sizes = [2, 32], strides = [1, 1]} : vector<2x128xf32> to vector<2x32xf32>
    %184 = vector.extract_strided_slice %181 {offsets = [0, 32], sizes = [2, 32], strides = [1, 1]} : vector<2x128xf32> to vector<2x32xf32>
    %185 = vector.extract_strided_slice %182 {offsets = [0, 64], sizes = [2, 32], strides = [1, 1]} : vector<2x128xf32> to vector<2x32xf32>
    %186 = vector.extract_strided_slice %181 {offsets = [0, 96], sizes = [2, 32], strides = [1, 1]} : vector<2x128xf32> to vector<2x32xf32>
    %187 = arith.mulf %184, %152 : vector<2x32xf32>
    %188 = arith.mulf %183, %185 : vector<2x32xf32>
    %189 = arith.addf %187, %188 : vector<2x32xf32>
    %190 = math.tanh %189 : vector<2x32xf32>
    %191 = arith.mulf %186, %190 : vector<2x32xf32>
    %192 = vector.extract_strided_slice %9 {offsets = [5, 0, 0], sizes = [1, 2, 128], strides = [1, 1, 1]} : vector<8x2x128xf32> to vector<1x2x128xf32>
    %193 = vector.shape_cast %192 : vector<1x2x128xf32> to vector<2x128xf32>
    %cst_30 = arith.constant dense<0.000000e+00> : vector<2x128xf32>
    %194 = tpu.matmul %173, %10, %cst_30 {dimension_numbers = #tpu.dot_dimension_numbers<[1], [0], [0], [1], [0, 0, 1, 1], [], []>} : vector<2x32xf32>, vector<32x128xf32>, vector<2x128xf32> -> vector<2x128xf32>
    %195 = arith.addf %193, %194 : vector<2x128xf32>
    %196 = arith.negf %195 : vector<2x128xf32>
    %197 = math.exp %196 : vector<2x128xf32>
    %cst_31 = arith.constant 1.000000e+00 : f32
    %198 = vector.broadcast %cst_31 : f32 to vector<2x128xf32>
    %199 = arith.addf %198, %197 : vector<2x128xf32>
    %200 = arith.divf %198, %199 : vector<2x128xf32>
    %201 = math.tanh %195 : vector<2x128xf32>
    %202 = vector.extract_strided_slice %200 {offsets = [0, 0], sizes = [2, 32], strides = [1, 1]} : vector<2x128xf32> to vector<2x32xf32>
    %203 = vector.extract_strided_slice %200 {offsets = [0, 32], sizes = [2, 32], strides = [1, 1]} : vector<2x128xf32> to vector<2x32xf32>
    %204 = vector.extract_strided_slice %201 {offsets = [0, 64], sizes = [2, 32], strides = [1, 1]} : vector<2x128xf32> to vector<2x32xf32>
    %205 = vector.extract_strided_slice %200 {offsets = [0, 96], sizes = [2, 32], strides = [1, 1]} : vector<2x128xf32> to vector<2x32xf32>
    %206 = arith.mulf %203, %171 : vector<2x32xf32>
    %207 = arith.mulf %202, %204 : vector<2x32xf32>
    %208 = arith.addf %206, %207 : vector<2x32xf32>
    %209 = math.tanh %208 : vector<2x32xf32>
    %210 = arith.mulf %205, %209 : vector<2x32xf32>
    %211 = tpu.concatenate %210, %191 in 1 : vector<2x32xf32>, vector<2x32xf32> -> vector<2x64xf32>
    %cst_32 = arith.constant dense<0.000000e+00> : vector<2x128xf32>
    %212 = tpu.matmul %211, %11, %cst_32 {dimension_numbers = #tpu.dot_dimension_numbers<[1], [0], [0], [1], [0, 0, 1, 1], [], []>} : vector<2x64xf32>, vector<64x128xf32>, vector<2x128xf32> -> vector<2x128xf32>
    %213 = arith.addf %212, %14 : vector<2x128xf32>
    %214 = arith.negf %213 : vector<2x128xf32>
    %215 = math.exp %214 : vector<2x128xf32>
    %cst_33 = arith.constant 1.000000e+00 : f32
    %216 = vector.broadcast %cst_33 : f32 to vector<2x128xf32>
    %217 = arith.addf %216, %215 : vector<2x128xf32>
    %218 = arith.divf %216, %217 : vector<2x128xf32>
    %219 = math.tanh %213 : vector<2x128xf32>
    %220 = vector.extract_strided_slice %218 {offsets = [0, 0], sizes = [2, 32], strides = [1, 1]} : vector<2x128xf32> to vector<2x32xf32>
    %221 = vector.extract_strided_slice %218 {offsets = [0, 32], sizes = [2, 32], strides = [1, 1]} : vector<2x128xf32> to vector<2x32xf32>
    %222 = vector.extract_strided_slice %219 {offsets = [0, 64], sizes = [2, 32], strides = [1, 1]} : vector<2x128xf32> to vector<2x32xf32>
    %223 = vector.extract_strided_slice %218 {offsets = [0, 96], sizes = [2, 32], strides = [1, 1]} : vector<2x128xf32> to vector<2x32xf32>
    %224 = arith.mulf %221, %189 : vector<2x32xf32>
    %225 = arith.mulf %220, %222 : vector<2x32xf32>
    %226 = arith.addf %224, %225 : vector<2x32xf32>
    %227 = math.tanh %226 : vector<2x32xf32>
    %228 = arith.mulf %223, %227 : vector<2x32xf32>
    %229 = vector.extract_strided_slice %9 {offsets = [6, 0, 0], sizes = [1, 2, 128], strides = [1, 1, 1]} : vector<8x2x128xf32> to vector<1x2x128xf32>
    %230 = vector.shape_cast %229 : vector<1x2x128xf32> to vector<2x128xf32>
    %cst_34 = arith.constant dense<0.000000e+00> : vector<2x128xf32>
    %231 = tpu.matmul %210, %10, %cst_34 {dimension_numbers = #tpu.dot_dimension_numbers<[1], [0], [0], [1], [0, 0, 1, 1], [], []>} : vector<2x32xf32>, vector<32x128xf32>, vector<2x128xf32> -> vector<2x128xf32>
    %232 = arith.addf %230, %231 : vector<2x128xf32>
    %233 = arith.negf %232 : vector<2x128xf32>
    %234 = math.exp %233 : vector<2x128xf32>
    %cst_35 = arith.constant 1.000000e+00 : f32
    %235 = vector.broadcast %cst_35 : f32 to vector<2x128xf32>
    %236 = arith.addf %235, %234 : vector<2x128xf32>
    %237 = arith.divf %235, %236 : vector<2x128xf32>
    %238 = math.tanh %232 : vector<2x128xf32>
    %239 = vector.extract_strided_slice %237 {offsets = [0, 0], sizes = [2, 32], strides = [1, 1]} : vector<2x128xf32> to vector<2x32xf32>
    %240 = vector.extract_strided_slice %237 {offsets = [0, 32], sizes = [2, 32], strides = [1, 1]} : vector<2x128xf32> to vector<2x32xf32>
    %241 = vector.extract_strided_slice %238 {offsets = [0, 64], sizes = [2, 32], strides = [1, 1]} : vector<2x128xf32> to vector<2x32xf32>
    %242 = vector.extract_strided_slice %237 {offsets = [0, 96], sizes = [2, 32], strides = [1, 1]} : vector<2x128xf32> to vector<2x32xf32>
    %243 = arith.mulf %240, %208 : vector<2x32xf32>
    %244 = arith.mulf %239, %241 : vector<2x32xf32>
    %245 = arith.addf %243, %244 : vector<2x32xf32>
    %246 = math.tanh %245 : vector<2x32xf32>
    %247 = arith.mulf %242, %246 : vector<2x32xf32>
    %248 = tpu.concatenate %247, %228 in 1 : vector<2x32xf32>, vector<2x32xf32> -> vector<2x64xf32>
    %cst_36 = arith.constant dense<0.000000e+00> : vector<2x128xf32>
    %249 = tpu.matmul %248, %11, %cst_36 {dimension_numbers = #tpu.dot_dimension_numbers<[1], [0], [0], [1], [0, 0, 1, 1], [], []>} : vector<2x64xf32>, vector<64x128xf32>, vector<2x128xf32> -> vector<2x128xf32>
    %250 = arith.addf %249, %14 : vector<2x128xf32>
    %251 = arith.negf %250 : vector<2x128xf32>
    %252 = math.exp %251 : vector<2x128xf32>
    %cst_37 = arith.constant 1.000000e+00 : f32
    %253 = vector.broadcast %cst_37 : f32 to vector<2x128xf32>
    %254 = arith.addf %253, %252 : vector<2x128xf32>
    %255 = arith.divf %253, %254 : vector<2x128xf32>
    %256 = math.tanh %250 : vector<2x128xf32>
    %257 = vector.extract_strided_slice %255 {offsets = [0, 0], sizes = [2, 32], strides = [1, 1]} : vector<2x128xf32> to vector<2x32xf32>
    %258 = vector.extract_strided_slice %255 {offsets = [0, 32], sizes = [2, 32], strides = [1, 1]} : vector<2x128xf32> to vector<2x32xf32>
    %259 = vector.extract_strided_slice %256 {offsets = [0, 64], sizes = [2, 32], strides = [1, 1]} : vector<2x128xf32> to vector<2x32xf32>
    %260 = vector.extract_strided_slice %255 {offsets = [0, 96], sizes = [2, 32], strides = [1, 1]} : vector<2x128xf32> to vector<2x32xf32>
    %261 = arith.mulf %258, %226 : vector<2x32xf32>
    %262 = arith.mulf %257, %259 : vector<2x32xf32>
    %263 = arith.addf %261, %262 : vector<2x32xf32>
    %264 = math.tanh %263 : vector<2x32xf32>
    %265 = arith.mulf %260, %264 : vector<2x32xf32>
    %266 = vector.extract_strided_slice %9 {offsets = [7, 0, 0], sizes = [1, 2, 128], strides = [1, 1, 1]} : vector<8x2x128xf32> to vector<1x2x128xf32>
    %267 = vector.shape_cast %266 : vector<1x2x128xf32> to vector<2x128xf32>
    %cst_38 = arith.constant dense<0.000000e+00> : vector<2x128xf32>
    %268 = tpu.matmul %247, %10, %cst_38 {dimension_numbers = #tpu.dot_dimension_numbers<[1], [0], [0], [1], [0, 0, 1, 1], [], []>} : vector<2x32xf32>, vector<32x128xf32>, vector<2x128xf32> -> vector<2x128xf32>
    %269 = arith.addf %267, %268 : vector<2x128xf32>
    %270 = arith.negf %269 : vector<2x128xf32>
    %271 = math.exp %270 : vector<2x128xf32>
    %cst_39 = arith.constant 1.000000e+00 : f32
    %272 = vector.broadcast %cst_39 : f32 to vector<2x128xf32>
    %273 = arith.addf %272, %271 : vector<2x128xf32>
    %274 = arith.divf %272, %273 : vector<2x128xf32>
    %275 = math.tanh %269 : vector<2x128xf32>
    %276 = vector.extract_strided_slice %274 {offsets = [0, 0], sizes = [2, 32], strides = [1, 1]} : vector<2x128xf32> to vector<2x32xf32>
    %277 = vector.extract_strided_slice %274 {offsets = [0, 32], sizes = [2, 32], strides = [1, 1]} : vector<2x128xf32> to vector<2x32xf32>
    %278 = vector.extract_strided_slice %275 {offsets = [0, 64], sizes = [2, 32], strides = [1, 1]} : vector<2x128xf32> to vector<2x32xf32>
    %279 = vector.extract_strided_slice %274 {offsets = [0, 96], sizes = [2, 32], strides = [1, 1]} : vector<2x128xf32> to vector<2x32xf32>
    %280 = arith.mulf %277, %245 : vector<2x32xf32>
    %281 = arith.mulf %276, %278 : vector<2x32xf32>
    %282 = arith.addf %280, %281 : vector<2x32xf32>
    %283 = math.tanh %282 : vector<2x32xf32>
    %284 = arith.mulf %279, %283 : vector<2x32xf32>
    %285 = tpu.concatenate %284, %265 in 1 : vector<2x32xf32>, vector<2x32xf32> -> vector<2x64xf32>
    %cst_40 = arith.constant dense<0.000000e+00> : vector<2x128xf32>
    %286 = tpu.matmul %285, %11, %cst_40 {dimension_numbers = #tpu.dot_dimension_numbers<[1], [0], [0], [1], [0, 0, 1, 1], [], []>} : vector<2x64xf32>, vector<64x128xf32>, vector<2x128xf32> -> vector<2x128xf32>
    %287 = arith.addf %286, %14 : vector<2x128xf32>
    %288 = arith.negf %287 : vector<2x128xf32>
    %289 = math.exp %288 : vector<2x128xf32>
    %cst_41 = arith.constant 1.000000e+00 : f32
    %290 = vector.broadcast %cst_41 : f32 to vector<2x128xf32>
    %291 = arith.addf %290, %289 : vector<2x128xf32>
    %292 = arith.divf %290, %291 : vector<2x128xf32>
    %293 = math.tanh %287 : vector<2x128xf32>
    %294 = vector.extract_strided_slice %292 {offsets = [0, 0], sizes = [2, 32], strides = [1, 1]} : vector<2x128xf32> to vector<2x32xf32>
    %295 = vector.extract_strided_slice %292 {offsets = [0, 32], sizes = [2, 32], strides = [1, 1]} : vector<2x128xf32> to vector<2x32xf32>
    %296 = vector.extract_strided_slice %293 {offsets = [0, 64], sizes = [2, 32], strides = [1, 1]} : vector<2x128xf32> to vector<2x32xf32>
    %297 = vector.extract_strided_slice %292 {offsets = [0, 96], sizes = [2, 32], strides = [1, 1]} : vector<2x128xf32> to vector<2x32xf32>
    %298 = arith.mulf %295, %263 : vector<2x32xf32>
    %299 = arith.mulf %294, %296 : vector<2x32xf32>
    %300 = arith.addf %298, %299 : vector<2x32xf32>
    %301 = math.tanh %300 : vector<2x32xf32>
    %302 = arith.mulf %297, %301 : vector<2x32xf32>
    %c0_42 = arith.constant 0 : index
    %c0_43 = arith.constant 0 : index
    %303 = vector.load %arg6[%c0_42, %c0_43] : memref<32x1xf32, #tpu.memory_space<vmem>>, vector<32x1xf32>
    %cst_44 = arith.constant dense<0.000000e+00> : vector<2x1xf32>
    %304 = tpu.matmul %302, %303, %cst_44 {dimension_numbers = #tpu.dot_dimension_numbers<[1], [0], [0], [1], [0, 0, 1, 1], [], []>} : vector<2x32xf32>, vector<32x1xf32>, vector<2x1xf32> -> vector<2x1xf32>
    %c0_45 = arith.constant 0 : index
    %c0_46 = arith.constant 0 : index
    %305 = vector.load %arg7[%c0_45, %c0_46] : memref<1x1xf32, #tpu.memory_space<vmem>>, vector<1x1xf32>
    %306 = vector.broadcast %305 : vector<1x1xf32> to vector<2x1xf32>
    %307 = arith.addf %304, %306 : vector<2x1xf32>
    %c0_47 = arith.constant 0 : index
    %c0_48 = arith.constant 0 : index
    %308 = vector.load %arg8[%c0_47, %c0_48] : memref<2x1xf32, #tpu.memory_space<vmem>>, vector<2x1xf32>
    tpu.vector_store %arg8[%c0_47, %c0_48], %307 {strides = array<i32>} : memref<2x1xf32, #tpu.memory_space<vmem>>, vector<2x1xf32>,
    return
  }
}

</mosaic_0001>

<llo_original>
// kernel: tpu_custom_call.1
$region0: #{tpu_custom_call.1}
  #allocation0 [shape = 'u32[]', space=smem, size = 0x4, offset = 0x4, fixed_abs, tag = 'smem constant byte address 0x4 - core index']
  #allocation1 [shape = 'u32[144,128]{1,0:T(1,128)}', space=vmem, size = 0x12000, scoped, tag = 'internal scratch']
  #allocation2 [shape = 'f32[1,1]{1,0:T(1,128)S(1)}', space=vmem, size = 0x200, scoped, tag = 'scoped memory for tpu_custom_call.1']
  %s0 = inlined_call_operand.vmem [shape: f32[8,2,1], index: 0, kind: input, shape index: {}]
  %s1 = inlined_call_operand.vmem [shape: f32[1,128], index: 1, kind: input, shape index: {}]
  %s2 = inlined_call_operand.hbm [shape: f32[32,128], index: 2, kind: input, shape index: {}]
  %s3 = inlined_call_operand.vmem [shape: f32[1,128], index: 3, kind: input, shape index: {}]
  %s4 = inlined_call_operand.vmem [shape: f32[64,128], index: 4, kind: input, shape index: {}]
  %s5 = inlined_call_operand.vmem [shape: f32[1,128], index: 5, kind: input, shape index: {}]
  %s6 = inlined_call_operand.vmem [shape: f32[32,1], index: 6, kind: input, shape index: {}]
  %s7 = inlined_call_operand.<no memory space> [shape: f32[1,1], index: 7, kind: input, shape index: {}]
  %s8 = inlined_call_operand.vmem [shape: f32[2,1], index: 8, kind: output, shape index: {}]
  %s9 = sld [smem:[#allocation0]]
  $region46: #{tpu_custom_call.1} parent=0
    _
  %s11 = ssub.s32 1, %s9
  %s12 = scalar_select 0, %s11, %s9
  %v13 = vstv %s7
  %14 = vst [vmem:[#allocation2] sm:$0x1] %v13
  $region1: #{tpu_custom_call.1} parent=0
    #allocation3 [shape = 'u8[16384]{0}', space=vmem, size = 0x4000, scoped, tag = 'input window, operand 2, single buffered']
    #allocation4 [shape = 's32[1]{0}', space=sflag, size = 0x4, scoped, tag = 'scoped memory for tpu_custom_call.1']
    %15 = vsyncpa [#allocation4], 0
    // Predicated region
    $region2: #{tpu_custom_call.1} parent=1 // pred_check
      _
    $region3: #{tpu_custom_call.1} parent=1 // pred_check_branch
      %17 = sbr.rel (0) target = $region5
    $region4: #{tpu_custom_call.1} parent=1 // pred_region
      _
    $region5: #{tpu_custom_call.1} parent=1 // pred_fallthru
      _
    // Predicated region
    $region6: #{tpu_custom_call.1} parent=1 // pred_check
      _
    $region7: #{tpu_custom_call.1} parent=1 // pred_check_branch
      %19 = sbr.rel (0) target = $region9
    $region8: #{tpu_custom_call.1} parent=1 // pred_region
      _
    $region9: #{tpu_custom_call.1} parent=1 // pred_fallthru
      _
    // Predicated region
    $region10: #{tpu_custom_call.1} parent=1 // pred_check
      _
    $region11: #{tpu_custom_call.1} parent=1 // pred_check_branch
      %21 = sbr.rel (0) target = $region13
    $region12: #{tpu_custom_call.1} parent=1 // pred_region
      %s23 = ssub.s32 512, 512
      %24 = vsyncadd [#allocation4], %s23
      %s25 = sshll.u32 [#allocation3], 4
      %s26 = int_to_ptr.vmem [resolvable:$true] %s25
      %31 = dma.hbm_to_vmem [thread:$0]  %s2, 512, %s26, [#allocation4], 128, 128, 8
    $region13: #{tpu_custom_call.1} parent=1 // pred_fallthru
      _
    // Predicated region
    $region14: #{tpu_custom_call.1} parent=1 // pred_check
      _
    $region15: #{tpu_custom_call.1} parent=1 // pred_check_branch
      %33 = sbr.rel (0) target = $region17
    $region16: #{tpu_custom_call.1} parent=1 // pred_region
      _
    $region17: #{tpu_custom_call.1} parent=1 // pred_fallthru
      _
    // Predicated region
    $region18: #{tpu_custom_call.1} parent=1 // pred_check
      _
    $region19: #{tpu_custom_call.1} parent=1 // pred_check_branch
      %35 = sbr.rel (0) target = $region21
    $region20: #{tpu_custom_call.1} parent=1 // pred_region
      _
    $region21: #{tpu_custom_call.1} parent=1 // pred_fallthru
      _
    // Predicated region
    $region22: #{tpu_custom_call.1} parent=1 // pred_check
      _
    $region23: #{tpu_custom_call.1} parent=1 // pred_check_branch
      %37 = sbr.rel (0) target = $region25
    $region24: #{tpu_custom_call.1} parent=1 // pred_region
      _
    $region25: #{tpu_custom_call.1} parent=1 // pred_fallthru
      _
    // Predicated region
    $region26: #{tpu_custom_call.1} parent=1 // pred_check
      _
    $region27: #{tpu_custom_call.1} parent=1 // pred_check_branch
      %39 = sbr.rel (0) target = $region29
    $region28: #{tpu_custom_call.1} parent=1 // pred_region
      _
    $region29: #{tpu_custom_call.1} parent=1 // pred_fallthru
      _
    // Predicated region
    $region30: #{tpu_custom_call.1} parent=1 // pred_check
      _
    $region31: #{tpu_custom_call.1} parent=1 // pred_check_branch
      %41 = sbr.rel (0) target = $region33
    $region32: #{tpu_custom_call.1} parent=1 // pred_region
      _
    $region33: #{tpu_custom_call.1} parent=1 // pred_fallthru
      _
    // Predicated region
    $region34: #{tpu_custom_call.1} parent=1 // pred_check
      _
    $region35: #{tpu_custom_call.1} parent=1 // pred_check_branch
      %43 = sbr.rel (0) target = $region37
    $region36: #{tpu_custom_call.1} parent=1 // pred_region
      %44 = dma.done [#allocation4], 512
    $region37: #{tpu_custom_call.1} parent=1 // pred_fallthru
      _
    %v45 = vld [vmem:[%s0] sm:$0x3]
    %v46 = vld [vmem:[%s0 + $0x2] sm:$0x3]
    %v47 = vld [vmem:[%s0 + $0x4] sm:$0x3]
    %v48 = vld [vmem:[%s0 + $0x6] sm:$0x3]
    %v49 = vld [vmem:[%s0 + $0x8] sm:$0x3]
    %v50 = vld [vmem:[%s0 + $0xa] sm:$0x3]
    %v51 = vld [vmem:[%s0 + $0xc] sm:$0x3]
    %v52 = vld [vmem:[%s0 + $0xe] sm:$0x3]
    %v53 = vld [vmem:[%s1] sm:$0x1]
    %55 = vset.pattern.permute.xlu0 0
    %56 = vperm.xlu0 %55, %v45
    %v57 = vpop.permute.xlu0 %56
    %60 = vset.pattern.permute.xlu0 0
    %61 = vperm.xlu0 %60, %v46
    %v62 = vpop.permute.xlu0 %61
    %65 = vset.pattern.permute.xlu0 0
    %66 = vperm.xlu0 %65, %v47
    %v67 = vpop.permute.xlu0 %66
    %70 = vset.pattern.permute.xlu0 0
    %71 = vperm.xlu0 %70, %v48
    %v72 = vpop.permute.xlu0 %71
    %75 = vset.pattern.permute.xlu0 0
    %76 = vperm.xlu0 %75, %v49
    %v77 = vpop.permute.xlu0 %76
    %80 = vset.pattern.permute.xlu0 0
    %81 = vperm.xlu0 %80, %v50
    %v82 = vpop.permute.xlu0 %81
    %85 = vset.pattern.permute.xlu0 0
    %86 = vperm.xlu0 %85, %v51
    %v87 = vpop.permute.xlu0 %86
    %90 = vset.pattern.permute.xlu0 0
    %91 = vperm.xlu0 %90, %v52
    %v92 = vpop.permute.xlu0 %91
    %v95 = vlaneseq
    %v96 = vshrl.u32 %v95, 7
    %v97 = vsub.s32 0, %v96
    %v98 = vrot.slane %v53, %v97
    %v100 = vmul.f32 %v57, %v98
    %v101 = vmul.f32 %v62, %v98
    %v102 = vmul.f32 %v67, %v98
    %v103 = vmul.f32 %v72, %v98
    %v104 = vmul.f32 %v77, %v98
    %v105 = vmul.f32 %v82, %v98
    %v106 = vmul.f32 %v87, %v98
    %v107 = vmul.f32 %v92, %v98
    %v108 = vld [vmem:[%s3] sm:$0x1]
    %v110 = vlaneseq
    %v111 = vshrl.u32 %v110, 7
    %v112 = vsub.s32 0, %v111
    %v113 = vrot.slane %v108, %v112
    %v115 = vadd.f32 %v100, %v113
    %v116 = vadd.f32 %v101, %v113
    %v117 = vadd.f32 %v102, %v113
    %v118 = vadd.f32 %v103, %v113
    %v119 = vadd.f32 %v104, %v113
    %v120 = vadd.f32 %v105, %v113
    %v121 = vadd.f32 %v106, %v113
    %v122 = vadd.f32 %v107, %v113
    %v123 = vld [vmem:[#allocation3] sm:$0xff]
    %v124 = vld [vmem:[#allocation3 + $0x8] sm:$0xff]
    %v125 = vld [vmem:[#allocation3 + $0x10] sm:$0xff]
    %v126 = vld [vmem:[#allocation3 + $0x18] sm:$0xff]
    %v127 = vld [vmem:[%s4] sm:$0xff]
    %v128 = vld [vmem:[%s4 + $0x8] sm:$0xff]
    %v129 = vld [vmem:[%s4 + $0x10] sm:$0xff]
    %v130 = vld [vmem:[%s4 + $0x18] sm:$0xff]
    %v131 = vld [vmem:[%s4 + $0x20] sm:$0xff]
    %v132 = vld [vmem:[%s4 + $0x28] sm:$0xff]
    %v133 = vld [vmem:[%s4 + $0x30] sm:$0xff]
    %v134 = vld [vmem:[%s4 + $0x38] sm:$0xff]
    %v135 = vld [vmem:[%s5] sm:$0x1]
    %v137 = vlaneseq
    %v138 = vshrl.u32 %v137, 7
    %v139 = vsub.s32 0, %v138
    %v140 = vrot.slane %v135, %v139
    %v142 = vxor.u32 %v115, 2147483648
    %v143 = vmul.f32 %v142, 1.442695
    %v144 = vpow.pop %v143
    %v145 = vadd.f32 %v144, 1.0
    %v146 = vrcp.pop %v145
    %v147 = vmul.f32 1.0, %v146
    %v148 = vtanh.pop %v115
    %150 = vrot.lane.b32.xlu0 %v148, 64
    %v151 = vpop.permute.xlu0 %150
    %v153 = vmul.f32 %v147, %v151
    %v154 = vtanh.pop %v153
    %156 = vrot.lane.b32.xlu0 %v154, 96
    %v157 = vpop.permute.xlu0 %156
    %v159 = vmul.f32 %v147, %v157
    %161 = vrot.lane.b32.xlu0 %v159, 32
    %v162 = vpop.permute.xlu0 %161
    %vm163 = vcmask 261120
    %v164 = vsel %vm163, %v162, 0
    %166 = vmatprep.subr.mxu0 0.0
    %167 = vmatpush1.msra.mxu0 %v127
    %168 = vmatprep.subr.mxu0 0.0
    %169 = vmatpush1.msra.mxu0 %v128
    %170 = vmatprep.subr.mxu0 0.0
    %171 = vmatpush1.msra.mxu0 %v129
    %172 = vmatprep.subr.mxu0 0.0
    %173 = vmatpush1.msra.mxu0 %v130
    %174 = vmatprep.subr.mxu0 0.0
    %175 = vmatpush1.msra.mxu0 0.0
    %176 = vmatprep.subr.mxu0 0.0
    %177 = vmatpush1.msra.mxu0 0.0
    %178 = vmatprep.subr.mxu0 0.0
    %179 = vmatpush1.msra.mxu0 0.0
    %180 = vmatprep.subr.mxu0 0.0
    %181 = vmatpush1.msra.mxu0 0.0
    %182 = vmatprep.subr.mxu0 0.0
    %183 = vmatpush1.msra.mxu0 0.0
    %184 = vmatprep.subr.mxu0 0.0
    %185 = vmatpush1.msra.mxu0 0.0
    %186 = vmatprep.subr.mxu0 0.0
    %187 = vmatpush1.msra.mxu0 0.0
    %188 = vmatprep.subr.mxu0 0.0
    %189 = vmatpush1.msra.mxu0 0.0
    %190 = vmatprep.subr.mxu0 0.0
    %191 = vmatpush1.msra.mxu0 0.0
    %192 = vmatprep.subr.mxu0 0.0
    %193 = vmatpush1.msra.mxu0 0.0
    %194 = vmatprep.subr.mxu0 0.0
    %195 = vmatpush1.msra.mxu0 0.0
    %196 = vmatprep.subr.mxu0 0.0
    %197 = vmatpush1.msra.mxu0 0.0
    %198 = vmatprep.subr.mxu0 0.0
    %199 = vmatpush1.msra.mxu0 0.0
    %200 = vmatprep.subr.mxu0 0.0
    %201 = vmatpush1.msra.mxu0 0.0
    %202 = vmatprep.subr.mxu0 0.0
    %203 = vmatpush1.msra.mxu0 0.0
    %204 = vmatprep.subr.mxu0 0.0
    %205 = vmatpush1.msra.mxu0 0.0
    %206 = vmatprep.subr.mxu0 0.0
    %207 = vmatpush1.msra.mxu0 0.0
    %208 = vmatprep.subr.mxu0 0.0
    %209 = vmatpush1.msra.mxu0 0.0
    %210 = vmatprep.subr.mxu0 0.0
    %211 = vmatpush1.msra.mxu0 0.0
    %212 = vmatprep.subr.mxu0 0.0
    %213 = vmatpush1.msra.mxu0 0.0
    %214 = vmatprep.subr.mxu0 0.0
    %215 = vmatpush1.msra.mxu0 0.0
    %216 = vmatprep.subr.mxu0 0.0
    %217 = vmatpush1.msra.mxu0 0.0
    %218 = vmatprep.subr.mxu0 0.0
    %219 = vmatpush1.msra.mxu0 0.0
    %220 = vmatprep.subr.mxu0 0.0
    %221 = vmatpush1.msra.mxu0 0.0
    %222 = vmatprep.subr.mxu0 0.0
    %223 = vmatpush1.msra.mxu0 0.0
    %224 = vmatprep.subr.mxu0 0.0
    %225 = vmatpush1.msra.mxu0 0.0
    %226 = vmatprep.subr.mxu0 0.0
    %227 = vmatpush1.msra.mxu0 0.0
    %228 = vmatprep.subr.mxu0 0.0
    %229 = vmatpush1.msra.mxu0 0.0
    %230 = vmatprep.mubr.f32.mxu0 0.0
    %231 = vmatmul.mubr.f32.gmra.mrb[0].mxu0 %v164
    %v232 = vpop.f32.mrb[0].mxu0
    %v233 = vadd.f32 %v140, %v232
    %v234 = vpop.f32.mrb[0].mxu0
    %235 = vdwg.mxu0
    %v236 = vxor.u32 %v233, 2147483648
    %v237 = vmul.f32 %v236, 1.442695
    %v238 = vpow.pop %v237
    %v239 = vadd.f32 %v238, 1.0
    %v240 = vrcp.pop %v239
    %v241 = vmul.f32 1.0, %v240
    %v242 = vtanh.pop %v233
    %244 = vrot.lane.b32.xlu0 %v242, 64
    %v245 = vpop.permute.xlu0 %244
    %v247 = vmul.f32 %v241, %v245
    %v248 = vtanh.pop %v247
    %250 = vrot.lane.b32.xlu0 %v248, 96
    %v251 = vpop.permute.xlu0 %250
    %v253 = vmul.f32 %v241, %v251
    %254 = vmatprep.subr.mxu0 0.0
    %255 = vmatpush1.msra.mxu0 %v123
    %256 = vmatprep.subr.mxu0 0.0
    %257 = vmatpush1.msra.mxu0 %v124
    %258 = vmatprep.subr.mxu0 0.0
    %259 = vmatpush1.msra.mxu0 %v125
    %260 = vmatprep.subr.mxu0 0.0
    %261 = vmatpush1.msra.mxu0 %v126
    %262 = vmatprep.subr.mxu0 0.0
    %263 = vmatpush1.msra.mxu0 0.0
    %264 = vmatprep.subr.mxu0 0.0
    %265 = vmatpush1.msra.mxu0 0.0
    %266 = vmatprep.subr.mxu0 0.0
    %267 = vmatpush1.msra.mxu0 0.0
    %268 = vmatprep.subr.mxu0 0.0
    %269 = vmatpush1.msra.mxu0 0.0
    %270 = vmatprep.subr.mxu0 0.0
    %271 = vmatpush1.msra.mxu0 0.0
    %272 = vmatprep.subr.mxu0 0.0
    %273 = vmatpush1.msra.mxu0 0.0
    %274 = vmatprep.subr.mxu0 0.0
    %275 = vmatpush1.msra.mxu0 0.0
    %276 = vmatprep.subr.mxu0 0.0
    %277 = vmatpush1.msra.mxu0 0.0
    %278 = vmatprep.subr.mxu0 0.0
    %279 = vmatpush1.msra.mxu0 0.0
    %280 = vmatprep.subr.mxu0 0.0
    %281 = vmatpush1.msra.mxu0 0.0
    %282 = vmatprep.subr.mxu0 0.0
    %283 = vmatpush1.msra.mxu0 0.0
    %284 = vmatprep.subr.mxu0 0.0
    %285 = vmatpush1.msra.mxu0 0.0
    %286 = vmatprep.subr.mxu0 0.0
    %287 = vmatpush1.msra.mxu0 0.0
    %288 = vmatprep.subr.mxu0 0.0
    %289 = vmatpush1.msra.mxu0 0.0
    %290 = vmatprep.subr.mxu0 0.0
    %291 = vmatpush1.msra.mxu0 0.0
    %292 = vmatprep.subr.mxu0 0.0
    %293 = vmatpush1.msra.mxu0 0.0
    %294 = vmatprep.subr.mxu0 0.0
    %295 = vmatpush1.msra.mxu0 0.0
    %296 = vmatprep.subr.mxu0 0.0
    %297 = vmatpush1.msra.mxu0 0.0
    %298 = vmatprep.subr.mxu0 0.0
    %299 = vmatpush1.msra.mxu0 0.0
    %300 = vmatprep.subr.mxu0 0.0
    %301 = vmatpush1.msra.mxu0 0.0
    %302 = vmatprep.subr.mxu0 0.0
    %303 = vmatpush1.msra.mxu0 0.0
    %304 = vmatprep.subr.mxu0 0.0
    %305 = vmatpush1.msra.mxu0 0.0
    %306 = vmatprep.subr.mxu0 0.0
    %307 = vmatpush1.msra.mxu0 0.0
    %308 = vmatprep.subr.mxu0 0.0
    %309 = vmatpush1.msra.mxu0 0.0
    %310 = vmatprep.subr.mxu0 0.0
    %311 = vmatpush1.msra.mxu0 0.0
    %312 = vmatprep.subr.mxu0 0.0
    %313 = vmatpush1.msra.mxu0 0.0
    %314 = vmatprep.subr.mxu0 0.0
    %315 = vmatpush1.msra.mxu0 0.0
    %316 = vmatprep.subr.mxu0 0.0
    %317 = vmatpush1.msra.mxu0 0.0
    %318 = vmatprep.mubr.f32.mxu0 0.0
    %319 = vmatmul.mubr.f32.gmra.mrb[0].mxu0 %v164
    %v320 = vpop.f32.mrb[0].mxu0
    %v321 = vadd.f32 0.0, %v320
    %v322 = vpop.f32.mrb[0].mxu0
    %323 = vdwg.mxu0
    %v324 = vadd.f32 %v116, %v321
    %v325 = vxor.u32 %v324, 2147483648
    %v326 = vmul.f32 %v325, 1.442695
    %v327 = vpow.pop %v326
    %v328 = vadd.f32 %v327, 1.0
    %v329 = vrcp.pop %v328
    %v330 = vmul.f32 1.0, %v329
    %v331 = vtanh.pop %v324
    %333 = vrot.lane.b32.xlu0 %v153, 32
    %v334 = vpop.permute.xlu0 %333
    %v336 = vmul.f32 %v330, %v334
    %338 = vrot.lane.b32.xlu0 %v331, 64
    %v339 = vpop.permute.xlu0 %338
    %v341 = vmul.f32 %v330, %v339
    %343 = vrot.lane.b32.xlu0 %v341, 32
    %v344 = vpop.permute.xlu0 %343
    %v346 = vadd.f32 %v336, %v344
    %v347 = vtanh.pop %v346
    %349 = vrot.lane.b32.xlu0 %v347, 64
    %v350 = vpop.permute.xlu0 %349
    %v352 = vmul.f32 %v330, %v350
    %354 = vrot.lane.b32.xlu0 %v352, 32
    %v355 = vpop.permute.xlu0 %354
    %358 = vrot.lane.b32.xlu0 %v253, 64
    %v359 = vpop.permute.xlu0 %358
    %v361 = vsel %vm163, %v355, %v359
    %vm362 = vcmask 523264
    %v364 = vsel %vm362, %v361, 0
    %366 = vmatprep.subr.mxu0 0.0
    %367 = vmatpush1.msra.mxu0 %v127
    %368 = vmatprep.subr.mxu0 0.0
    %369 = vmatpush1.msra.mxu0 %v128
    %370 = vmatprep.subr.mxu0 0.0
    %371 = vmatpush1.msra.mxu0 %v129
    %372 = vmatprep.subr.mxu0 0.0
    %373 = vmatpush1.msra.mxu0 %v130
    %374 = vmatprep.subr.mxu0 0.0
    %375 = vmatpush1.msra.mxu0 %v131
    %376 = vmatprep.subr.mxu0 0.0
    %377 = vmatpush1.msra.mxu0 %v132
    %378 = vmatprep.subr.mxu0 0.0
    %379 = vmatpush1.msra.mxu0 %v133
    %380 = vmatprep.subr.mxu0 0.0
    %381 = vmatpush1.msra.mxu0 %v134
    %382 = vmatprep.subr.mxu0 0.0
    %383 = vmatpush1.msra.mxu0 0.0
    %384 = vmatprep.subr.mxu0 0.0
    %385 = vmatpush1.msra.mxu0 0.0
    %386 = vmatprep.subr.mxu0 0.0
    %387 = vmatpush1.msra.mxu0 0.0
    %388 = vmatprep.subr.mxu0 0.0
    %389 = vmatpush1.msra.mxu0 0.0
    %390 = vmatprep.subr.mxu0 0.0
    %391 = vmatpush1.msra.mxu0 0.0
    %392 = vmatprep.subr.mxu0 0.0
    %393 = vmatpush1.msra.mxu0 0.0
    %394 = vmatprep.subr.mxu0 0.0
    %395 = vmatpush1.msra.mxu0 0.0
    %396 = vmatprep.subr.mxu0 0.0
    %397 = vmatpush1.msra.mxu0 0.0
    %398 = vmatprep.subr.mxu0 0.0
    %399 = vmatpush1.msra.mxu0 0.0
    %400 = vmatprep.subr.mxu0 0.0
    %401 = vmatpush1.msra.mxu0 0.0
    %402 = vmatprep.subr.mxu0 0.0
    %403 = vmatpush1.msra.mxu0 0.0
    %404 = vmatprep.subr.mxu0 0.0
    %405 = vmatpush1.msra.mxu0 0.0
    %406 = vmatprep.subr.mxu0 0.0
    %407 = vmatpush1.msra.mxu0 0.0
    %408 = vmatprep.subr.mxu0 0.0
    %409 = vmatpush1.msra.mxu0 0.0
    %410 = vmatprep.subr.mxu0 0.0
    %411 = vmatpush1.msra.mxu0 0.0
    %412 = vmatprep.subr.mxu0 0.0
    %413 = vmatpush1.msra.mxu0 0.0
    %414 = vmatprep.subr.mxu0 0.0
    %415 = vmatpush1.msra.mxu0 0.0
    %416 = vmatprep.subr.mxu0 0.0
    %417 = vmatpush1.msra.mxu0 0.0
    %418 = vmatprep.subr.mxu0 0.0
    %419 = vmatpush1.msra.mxu0 0.0
    %420 = vmatprep.subr.mxu0 0.0
    %421 = vmatpush1.msra.mxu0 0.0
    %422 = vmatprep.subr.mxu0 0.0
    %423 = vmatpush1.msra.mxu0 0.0
    %424 = vmatprep.subr.mxu0 0.0
    %425 = vmatpush1.msra.mxu0 0.0
    %426 = vmatprep.subr.mxu0 0.0
    %427 = vmatpush1.msra.mxu0 0.0
    %428 = vmatprep.subr.mxu0 0.0
    %429 = vmatpush1.msra.mxu0 0.0
    %430 = vmatprep.mubr.f32.mxu0 0.0
    %431 = vmatmul.mubr.f32.gmra.mrb[0].mxu0 %v364
    %v432 = vpop.f32.mrb[0].mxu0
    %v433 = vadd.f32 %v140, %v432
    %v434 = vpop.f32.mrb[0].mxu0
    %435 = vdwg.mxu0
    %v436 = vxor.u32 %v433, 2147483648
    %v437 = vmul.f32 %v436, 1.442695
    %v438 = vpow.pop %v437
    %v439 = vadd.f32 %v438, 1.0
    %v440 = vrcp.pop %v439
    %v441 = vmul.f32 1.0, %v440
    %v442 = vtanh.pop %v433
    %444 = vrot.lane.b32.xlu0 %v247, 32
    %v445 = vpop.permute.xlu0 %444
    %v447 = vmul.f32 %v441, %v445
    %449 = vrot.lane.b32.xlu0 %v442, 64
    %v450 = vpop.permute.xlu0 %449
    %v452 = vmul.f32 %v441, %v450
    %454 = vrot.lane.b32.xlu0 %v452, 32
    %v455 = vpop.permute.xlu0 %454
    %v457 = vadd.f32 %v447, %v455
    %v458 = vtanh.pop %v457
    %460 = vrot.lane.b32.xlu0 %v458, 64
    %v461 = vpop.permute.xlu0 %460
    %v463 = vmul.f32 %v441, %v461
    %v464 = vsel %vm163, %v355, 0
    %466 = vmatprep.subr.mxu0 0.0
    %467 = vmatpush1.msra.mxu0 %v123
    %468 = vmatprep.subr.mxu0 0.0
    %469 = vmatpush1.msra.mxu0 %v124
    %470 = vmatprep.subr.mxu0 0.0
    %471 = vmatpush1.msra.mxu0 %v125
    %472 = vmatprep.subr.mxu0 0.0
    %473 = vmatpush1.msra.mxu0 %v126
    %474 = vmatprep.subr.mxu0 0.0
    %475 = vmatpush1.msra.mxu0 0.0
    %476 = vmatprep.subr.mxu0 0.0
    %477 = vmatpush1.msra.mxu0 0.0
    %478 = vmatprep.subr.mxu0 0.0
    %479 = vmatpush1.msra.mxu0 0.0
    %480 = vmatprep.subr.mxu0 0.0
    %481 = vmatpush1.msra.mxu0 0.0
    %482 = vmatprep.subr.mxu0 0.0
    %483 = vmatpush1.msra.mxu0 0.0
    %484 = vmatprep.subr.mxu0 0.0
    %485 = vmatpush1.msra.mxu0 0.0
    %486 = vmatprep.subr.mxu0 0.0
    %487 = vmatpush1.msra.mxu0 0.0
    %488 = vmatprep.subr.mxu0 0.0
    %489 = vmatpush1.msra.mxu0 0.0
    %490 = vmatprep.subr.mxu0 0.0
    %491 = vmatpush1.msra.mxu0 0.0
    %492 = vmatprep.subr.mxu0 0.0
    %493 = vmatpush1.msra.mxu0 0.0
    %494 = vmatprep.subr.mxu0 0.0
    %495 = vmatpush1.msra.mxu0 0.0
    %496 = vmatprep.subr.mxu0 0.0
    %497 = vmatpush1.msra.mxu0 0.0
    %498 = vmatprep.subr.mxu0 0.0
    %499 = vmatpush1.msra.mxu0 0.0
    %500 = vmatprep.subr.mxu0 0.0
    %501 = vmatpush1.msra.mxu0 0.0
    %502 = vmatprep.subr.mxu0 0.0
    %503 = vmatpush1.msra.mxu0 0.0
    %504 = vmatprep.subr.mxu0 0.0
    %505 = vmatpush1.msra.mxu0 0.0
    %506 = vmatprep.subr.mxu0 0.0
    %507 = vmatpush1.msra.mxu0 0.0
    %508 = vmatprep.subr.mxu0 0.0
    %509 = vmatpush1.msra.mxu0 0.0
    %510 = vmatprep.subr.mxu0 0.0
    %511 = vmatpush1.msra.mxu0 0.0
    %512 = vmatprep.subr.mxu0 0.0
    %513 = vmatpush1.msra.mxu0 0.0
    %514 = vmatprep.subr.mxu0 0.0
    %515 = vmatpush1.msra.mxu0 0.0
    %516 = vmatprep.subr.mxu0 0.0
    %517 = vmatpush1.msra.mxu0 0.0
    %518 = vmatprep.subr.mxu0 0.0
    %519 = vmatpush1.msra.mxu0 0.0
    %520 = vmatprep.subr.mxu0 0.0
    %521 = vmatpush1.msra.mxu0 0.0
    %522 = vmatprep.subr.mxu0 0.0
    %523 = vmatpush1.msra.mxu0 0.0
    %524 = vmatprep.subr.mxu0 0.0
    %525 = vmatpush1.msra.mxu0 0.0
    %526 = vmatprep.subr.mxu0 0.0
    %527 = vmatpush1.msra.mxu0 0.0
    %528 = vmatprep.subr.mxu0 0.0
    %529 = vmatpush1.msra.mxu0 0.0
    %530 = vmatprep.mubr.f32.mxu0 0.0
    %531 = vmatmul.mubr.f32.gmra.mrb[0].mxu0 %v464
    %v532 = vpop.f32.mrb[0].mxu0
    %v533 = vadd.f32 0.0, %v532
    %v534 = vpop.f32.mrb[0].mxu0
    %535 = vdwg.mxu0
    %v536 = vadd.f32 %v117, %v533
    %v537 = vxor.u32 %v536, 2147483648
    %v538 = vmul.f32 %v537, 1.442695
    %v539 = vpow.pop %v538
    %v540 = vadd.f32 %v539, 1.0
    %v541 = vrcp.pop %v540
    %v542 = vmul.f32 1.0, %v541
    %v543 = vtanh.pop %v536
    %v544 = vmul.f32 %v542, %v346
    %546 = vrot.lane.b32.xlu0 %v543, 64
    %v547 = vpop.permute.xlu0 %546
    %v549 = vmul.f32 %v542, %v547
    %551 = vrot.lane.b32.xlu0 %v549, 32
    %v552 = vpop.permute.xlu0 %551
    %v554 = vadd.f32 %v544, %v552
    %v555 = vtanh.pop %v554
    %557 = vrot.lane.b32.xlu0 %v555, 64
    %v558 = vpop.permute.xlu0 %557
    %v560 = vmul.f32 %v542, %v558
    %562 = vrot.lane.b32.xlu0 %v560, 32
    %v563 = vpop.permute.xlu0 %562
    %566 = vrot.lane.b32.xlu0 %v463, 64
    %v567 = vpop.permute.xlu0 %566
    %v569 = vsel %vm163, %v563, %v567
    %v571 = vsel %vm362, %v569, 0
    %573 = vmatprep.subr.mxu0 0.0
    %574 = vmatpush1.msra.mxu0 %v127
    %575 = vmatprep.subr.mxu0 0.0
    %576 = vmatpush1.msra.mxu0 %v128
    %577 = vmatprep.subr.mxu0 0.0
    %578 = vmatpush1.msra.mxu0 %v129
    %579 = vmatprep.subr.mxu0 0.0
    %580 = vmatpush1.msra.mxu0 %v130
    %581 = vmatprep.subr.mxu0 0.0
    %582 = vmatpush1.msra.mxu0 %v131
    %583 = vmatprep.subr.mxu0 0.0
    %584 = vmatpush1.msra.mxu0 %v132
    %585 = vmatprep.subr.mxu0 0.0
    %586 = vmatpush1.msra.mxu0 %v133
    %587 = vmatprep.subr.mxu0 0.0
    %588 = vmatpush1.msra.mxu0 %v134
    %589 = vmatprep.subr.mxu0 0.0
    %590 = vmatpush1.msra.mxu0 0.0
    %591 = vmatprep.subr.mxu0 0.0
    %592 = vmatpush1.msra.mxu0 0.0
    %593 = vmatprep.subr.mxu0 0.0
    %594 = vmatpush1.msra.mxu0 0.0
    %595 = vmatprep.subr.mxu0 0.0
    %596 = vmatpush1.msra.mxu0 0.0
    %597 = vmatprep.subr.mxu0 0.0
    %598 = vmatpush1.msra.mxu0 0.0
    %599 = vmatprep.subr.mxu0 0.0
    %600 = vmatpush1.msra.mxu0 0.0
    %601 = vmatprep.subr.mxu0 0.0
    %602 = vmatpush1.msra.mxu0 0.0
    %603 = vmatprep.subr.mxu0 0.0
    %604 = vmatpush1.msra.mxu0 0.0
    %605 = vmatprep.subr.mxu0 0.0
    %606 = vmatpush1.msra.mxu0 0.0
    %607 = vmatprep.subr.mxu0 0.0
    %608 = vmatpush1.msra.mxu0 0.0
    %609 = vmatprep.subr.mxu0 0.0
    %610 = vmatpush1.msra.mxu0 0.0
    %611 = vmatprep.subr.mxu0 0.0
    %612 = vmatpush1.msra.mxu0 0.0
    %613 = vmatprep.subr.mxu0 0.0
    %614 = vmatpush1.msra.mxu0 0.0
    %615 = vmatprep.subr.mxu0 0.0
    %616 = vmatpush1.msra.mxu0 0.0
    %617 = vmatprep.subr.mxu0 0.0
    %618 = vmatpush1.msra.mxu0 0.0
    %619 = vmatprep.subr.mxu0 0.0
    %620 = vmatpush1.msra.mxu0 0.0
    %621 = vmatprep.subr.mxu0 0.0
    %622 = vmatpush1.msra.mxu0 0.0
    %623 = vmatprep.subr.mxu0 0.0
    %624 = vmatpush1.msra.mxu0 0.0
    %625 = vmatprep.subr.mxu0 0.0
    %626 = vmatpush1.msra.mxu0 0.0
    %627 = vmatprep.subr.mxu0 0.0
    %628 = vmatpush1.msra.mxu0 0.0
    %629 = vmatprep.subr.mxu0 0.0
    %630 = vmatpush1.msra.mxu0 0.0
    %631 = vmatprep.subr.mxu0 0.0
    %632 = vmatpush1.msra.mxu0 0.0
    %633 = vmatprep.subr.mxu0 0.0
    %634 = vmatpush1.msra.mxu0 0.0
    %635 = vmatprep.subr.mxu0 0.0
    %636 = vmatpush1.msra.mxu0 0.0
    %637 = vmatprep.mubr.f32.mxu0 0.0
    %638 = vmatmul.mubr.f32.gmra.mrb[0].mxu0 %v571
    %v639 = vpop.f32.mrb[0].mxu0
    %v640 = vadd.f32 %v140, %v639
    %v641 = vpop.f32.mrb[0].mxu0
    %642 = vdwg.mxu0
    %v643 = vxor.u32 %v640, 2147483648
    %v644 = vmul.f32 %v643, 1.442695
    %v645 = vpow.pop %v644
    %v646 = vadd.f32 %v645, 1.0
    %v647 = vrcp.pop %v646
    %v648 = vmul.f32 1.0, %v647
    %v649 = vtanh.pop %v640
    %v650 = vmul.f32 %v648, %v457
    %652 = vrot.lane.b32.xlu0 %v649, 64
    %v653 = vpop.permute.xlu0 %652
    %v655 = vmul.f32 %v648, %v653
    %657 = vrot.lane.b32.xlu0 %v655, 32
    %v658 = vpop.permute.xlu0 %657
    %v660 = vadd.f32 %v650, %v658
    %v661 = vtanh.pop %v660
    %663 = vrot.lane.b32.xlu0 %v661, 64
    %v664 = vpop.permute.xlu0 %663
    %v666 = vmul.f32 %v648, %v664
    %v667 = vsel %vm163, %v563, 0
    %669 = vmatprep.subr.mxu0 0.0
    %670 = vmatpush1.msra.mxu0 %v123
    %671 = vmatprep.subr.mxu0 0.0
    %672 = vmatpush1.msra.mxu0 %v124
    %673 = vmatprep.subr.mxu0 0.0
    %674 = vmatpush1.msra.mxu0 %v125
    %675 = vmatprep.subr.mxu0 0.0
    %676 = vmatpush1.msra.mxu0 %v126
    %677 = vmatprep.subr.mxu0 0.0
    %678 = vmatpush1.msra.mxu0 0.0
    %679 = vmatprep.subr.mxu0 0.0
    %680 = vmatpush1.msra.mxu0 0.0
    %681 = vmatprep.subr.mxu0 0.0
    %682 = vmatpush1.msra.mxu0 0.0
    %683 = vmatprep.subr.mxu0 0.0
    %684 = vmatpush1.msra.mxu0 0.0
    %685 = vmatprep.subr.mxu0 0.0
    %686 = vmatpush1.msra.mxu0 0.0
    %687 = vmatprep.subr.mxu0 0.0
    %688 = vmatpush1.msra.mxu0 0.0
    %689 = vmatprep.subr.mxu0 0.0
    %690 = vmatpush1.msra.mxu0 0.0
    %691 = vmatprep.subr.mxu0 0.0
    %692 = vmatpush1.msra.mxu0 0.0
    %693 = vmatprep.subr.mxu0 0.0
    %694 = vmatpush1.msra.mxu0 0.0
    %695 = vmatprep.subr.mxu0 0.0
    %696 = vmatpush1.msra.mxu0 0.0
    %697 = vmatprep.subr.mxu0 0.0
    %698 = vmatpush1.msra.mxu0 0.0
    %699 = vmatprep.subr.mxu0 0.0
    %700 = vmatpush1.msra.mxu0 0.0
    %701 = vmatprep.subr.mxu0 0.0
    %702 = vmatpush1.msra.mxu0 0.0
    %703 = vmatprep.subr.mxu0 0.0
    %704 = vmatpush1.msra.mxu0 0.0
    %705 = vmatprep.subr.mxu0 0.0
    %706 = vmatpush1.msra.mxu0 0.0
    %707 = vmatprep.subr.mxu0 0.0
    %708 = vmatpush1.msra.mxu0 0.0
    %709 = vmatprep.subr.mxu0 0.0
    %710 = vmatpush1.msra.mxu0 0.0
    %711 = vmatprep.subr.mxu0 0.0
    %712 = vmatpush1.msra.mxu0 0.0
    %713 = vmatprep.subr.mxu0 0.0
    %714 = vmatpush1.msra.mxu0 0.0
    %715 = vmatprep.subr.mxu0 0.0
    %716 = vmatpush1.msra.mxu0 0.0
    %717 = vmatprep.subr.mxu0 0.0
    %718 = vmatpush1.msra.mxu0 0.0
    %719 = vmatprep.subr.mxu0 0.0
    %720 = vmatpush1.msra.mxu0 0.0
    %721 = vmatprep.subr.mxu0 0.0
    %722 = vmatpush1.msra.mxu0 0.0
    %723 = vmatprep.subr.mxu0 0.0
    %724 = vmatpush1.msra.mxu0 0.0
    %725 = vmatprep.subr.mxu0 0.0
    %726 = vmatpush1.msra.mxu0 0.0
    %727 = vmatprep.subr.mxu0 0.0
    %728 = vmatpush1.msra.mxu0 0.0
    %729 = vmatprep.subr.mxu0 0.0
    %730 = vmatpush1.msra.mxu0 0.0
    %731 = vmatprep.subr.mxu0 0.0
    %732 = vmatpush1.msra.mxu0 0.0
    %733 = vmatprep.mubr.f32.mxu0 0.0
    %734 = vmatmul.mubr.f32.gmra.mrb[0].mxu0 %v667
    %v735 = vpop.f32.mrb[0].mxu0
    %v736 = vadd.f32 0.0, %v735
    %v737 = vpop.f32.mrb[0].mxu0
    %738 = vdwg.mxu0
    %v739 = vadd.f32 %v118, %v736
    %v740 = vxor.u32 %v739, 2147483648
    %v741 = vmul.f32 %v740, 1.442695
    %v742 = vpow.pop %v741
    %v743 = vadd.f32 %v742, 1.0
    %v744 = vrcp.pop %v743
    %v745 = vmul.f32 1.0, %v744
    %v746 = vtanh.pop %v739
    %v747 = vmul.f32 %v745, %v554
    %749 = vrot.lane.b32.xlu0 %v746, 64
    %v750 = vpop.permute.xlu0 %749
    %v752 = vmul.f32 %v745, %v750
    %754 = vrot.lane.b32.xlu0 %v752, 32
    %v755 = vpop.permute.xlu0 %754
    %v757 = vadd.f32 %v747, %v755
    %v758 = vtanh.pop %v757
    %760 = vrot.lane.b32.xlu0 %v758, 64
    %v761 = vpop.permute.xlu0 %760
    %v763 = vmul.f32 %v745, %v761
    %765 = vrot.lane.b32.xlu0 %v763, 32
    %v766 = vpop.permute.xlu0 %765
    %769 = vrot.lane.b32.xlu0 %v666, 64
    %v770 = vpop.permute.xlu0 %769
    %v772 = vsel %vm163, %v766, %v770
    %v774 = vsel %vm362, %v772, 0
    %776 = vmatprep.subr.mxu0 0.0
    %777 = vmatpush1.msra.mxu0 %v127
    %778 = vmatprep.subr.mxu0 0.0
    %779 = vmatpush1.msra.mxu0 %v128
    %780 = vmatprep.subr.mxu0 0.0
    %781 = vmatpush1.msra.mxu0 %v129
    %782 = vmatprep.subr.mxu0 0.0
    %783 = vmatpush1.msra.mxu0 %v130
    %784 = vmatprep.subr.mxu0 0.0
    %785 = vmatpush1.msra.mxu0 %v131
    %786 = vmatprep.subr.mxu0 0.0
    %787 = vmatpush1.msra.mxu0 %v132
    %788 = vmatprep.subr.mxu0 0.0
    %789 = vmatpush1.msra.mxu0 %v133
    %790 = vmatprep.subr.mxu0 0.0
    %791 = vmatpush1.msra.mxu0 %v134
    %792 = vmatprep.subr.mxu0 0.0
    %793 = vmatpush1.msra.mxu0 0.0
    %794 = vmatprep.subr.mxu0 0.0
    %795 = vmatpush1.msra.mxu0 0.0
    %796 = vmatprep.subr.mxu0 0.0
    %797 = vmatpush1.msra.mxu0 0.0
    %798 = vmatprep.subr.mxu0 0.0
    %799 = vmatpush1.msra.mxu0 0.0
    %800 = vmatprep.subr.mxu0 0.0
    %801 = vmatpush1.msra.mxu0 0.0
    %802 = vmatprep.subr.mxu0 0.0
    %803 = vmatpush1.msra.mxu0 0.0
    %804 = vmatprep.subr.mxu0 0.0
    %805 = vmatpush1.msra.mxu0 0.0
    %806 = vmatprep.subr.mxu0 0.0
    %807 = vmatpush1.msra.mxu0 0.0
    %808 = vmatprep.subr.mxu0 0.0
    %809 = vmatpush1.msra.mxu0 0.0
    %810 = vmatprep.subr.mxu0 0.0
    %811 = vmatpush1.msra.mxu0 0.0
    %812 = vmatprep.subr.mxu0 0.0
    %813 = vmatpush1.msra.mxu0 0.0
    %814 = vmatprep.subr.mxu0 0.0
    %815 = vmatpush1.msra.mxu0 0.0
    %816 = vmatprep.subr.mxu0 0.0
    %817 = vmatpush1.msra.mxu0 0.0
    %818 = vmatprep.subr.mxu0 0.0
    %819 = vmatpush1.msra.mxu0 0.0
    %820 = vmatprep.subr.mxu0 0.0
    %821 = vmatpush1.msra.mxu0 0.0
    %822 = vmatprep.subr.mxu0 0.0
    %823 = vmatpush1.msra.mxu0 0.0
    %824 = vmatprep.subr.mxu0 0.0
    %825 = vmatpush1.msra.mxu0 0.0
    %826 = vmatprep.subr.mxu0 0.0
    %827 = vmatpush1.msra.mxu0 0.0
    %828 = vmatprep.subr.mxu0 0.0
    %829 = vmatpush1.msra.mxu0 0.0
    %830 = vmatprep.subr.mxu0 0.0
    %831 = vmatpush1.msra.mxu0 0.0
    %832 = vmatprep.subr.mxu0 0.0
    %833 = vmatpush1.msra.mxu0 0.0
    %834 = vmatprep.subr.mxu0 0.0
    %835 = vmatpush1.msra.mxu0 0.0
    %836 = vmatprep.subr.mxu0 0.0
    %837 = vmatpush1.msra.mxu0 0.0
    %838 = vmatprep.subr.mxu0 0.0
    %839 = vmatpush1.msra.mxu0 0.0
    %840 = vmatprep.mubr.f32.mxu0 0.0
    %841 = vmatmul.mubr.f32.gmra.mrb[0].mxu0 %v774
    %v842 = vpop.f32.mrb[0].mxu0
    %v843 = vadd.f32 %v140, %v842
    %v844 = vpop.f32.mrb[0].mxu0
    %845 = vdwg.mxu0
    %v846 = vxor.u32 %v843, 2147483648
    %v847 = vmul.f32 %v846, 1.442695
    %v848 = vpow.pop %v847
    %v849 = vadd.f32 %v848, 1.0
    %v850 = vrcp.pop %v849
    %v851 = vmul.f32 1.0, %v850
    %v852 = vtanh.pop %v843
    %v853 = vmul.f32 %v851, %v660
    %855 = vrot.lane.b32.xlu0 %v852, 64
    %v856 = vpop.permute.xlu0 %855
    %v858 = vmul.f32 %v851, %v856
    %860 = vrot.lane.b32.xlu0 %v858, 32
    %v861 = vpop.permute.xlu0 %860
    %v863 = vadd.f32 %v853, %v861
    %v864 = vtanh.pop %v863
    %866 = vrot.lane.b32.xlu0 %v864, 64
    %v867 = vpop.permute.xlu0 %866
    %v869 = vmul.f32 %v851, %v867
    %v870 = vsel %vm163, %v766, 0
    %872 = vmatprep.subr.mxu0 0.0
    %873 = vmatpush1.msra.mxu0 %v123
    %874 = vmatprep.subr.mxu0 0.0
    %875 = vmatpush1.msra.mxu0 %v124
    %876 = vmatprep.subr.mxu0 0.0
    %877 = vmatpush1.msra.mxu0 %v125
    %878 = vmatprep.subr.mxu0 0.0
    %879 = vmatpush1.msra.mxu0 %v126
    %880 = vmatprep.subr.mxu0 0.0
    %881 = vmatpush1.msra.mxu0 0.0
    %882 = vmatprep.subr.mxu0 0.0
    %883 = vmatpush1.msra.mxu0 0.0
    %884 = vmatprep.subr.mxu0 0.0
    %885 = vmatpush1.msra.mxu0 0.0
    %886 = vmatprep.subr.mxu0 0.0
    %887 = vmatpush1.msra.mxu0 0.0
    %888 = vmatprep.subr.mxu0 0.0
    %889 = vmatpush1.msra.mxu0 0.0
    %890 = vmatprep.subr.mxu0 0.0
    %891 = vmatpush1.msra.mxu0 0.0
    %892 = vmatprep.subr.mxu0 0.0
    %893 = vmatpush1.msra.mxu0 0.0
    %894 = vmatprep.subr.mxu0 0.0
    %895 = vmatpush1.msra.mxu0 0.0
    %896 = vmatprep.subr.mxu0 0.0
    %897 = vmatpush1.msra.mxu0 0.0
    %898 = vmatprep.subr.mxu0 0.0
    %899 = vmatpush1.msra.mxu0 0.0
    %900 = vmatprep.subr.mxu0 0.0
    %901 = vmatpush1.msra.mxu0 0.0
    %902 = vmatprep.subr.mxu0 0.0
    %903 = vmatpush1.msra.mxu0 0.0
    %904 = vmatprep.subr.mxu0 0.0
    %905 = vmatpush1.msra.mxu0 0.0
    %906 = vmatprep.subr.mxu0 0.0
    %907 = vmatpush1.msra.mxu0 0.0
    %908 = vmatprep.subr.mxu0 0.0
    %909 = vmatpush1.msra.mxu0 0.0
    %910 = vmatprep.subr.mxu0 0.0
    %911 = vmatpush1.msra.mxu0 0.0
    %912 = vmatprep.subr.mxu0 0.0
    %913 = vmatpush1.msra.mxu0 0.0
    %914 = vmatprep.subr.mxu0 0.0
    %915 = vmatpush1.msra.mxu0 0.0
    %916 = vmatprep.subr.mxu0 0.0
    %917 = vmatpush1.msra.mxu0 0.0
    %918 = vmatprep.subr.mxu0 0.0
    %919 = vmatpush1.msra.mxu0 0.0
    %920 = vmatprep.subr.mxu0 0.0
    %921 = vmatpush1.msra.mxu0 0.0
    %922 = vmatprep.subr.mxu0 0.0
    %923 = vmatpush1.msra.mxu0 0.0
    %924 = vmatprep.subr.mxu0 0.0
    %925 = vmatpush1.msra.mxu0 0.0
    %926 = vmatprep.subr.mxu0 0.0
    %927 = vmatpush1.msra.mxu0 0.0
    %928 = vmatprep.subr.mxu0 0.0
    %929 = vmatpush1.msra.mxu0 0.0
    %930 = vmatprep.subr.mxu0 0.0
    %931 = vmatpush1.msra.mxu0 0.0
    %932 = vmatprep.subr.mxu0 0.0
    %933 = vmatpush1.msra.mxu0 0.0
    %934 = vmatprep.subr.mxu0 0.0
    %935 = vmatpush1.msra.mxu0 0.0
    %936 = vmatprep.mubr.f32.mxu0 0.0
    %937 = vmatmul.mubr.f32.gmra.mrb[0].mxu0 %v870
    %v938 = vpop.f32.mrb[0].mxu0
    %v939 = vadd.f32 0.0, %v938
    %v940 = vpop.f32.mrb[0].mxu0
    %941 = vdwg.mxu0
    %v942 = vadd.f32 %v119, %v939
    %v943 = vxor.u32 %v942, 2147483648
    %v944 = vmul.f32 %v943, 1.442695
    %v945 = vpow.pop %v944
    %v946 = vadd.f32 %v945, 1.0
    %v947 = vrcp.pop %v946
    %v948 = vmul.f32 1.0, %v947
    %v949 = vtanh.pop %v942
    %v950 = vmul.f32 %v948, %v757
    %952 = vrot.lane.b32.xlu0 %v949, 64
    %v953 = vpop.permute.xlu0 %952
    %v955 = vmul.f32 %v948, %v953
    %957 = vrot.lane.b32.xlu0 %v955, 32
    %v958 = vpop.permute.xlu0 %957
    %v960 = vadd.f32 %v950, %v958
    %v961 = vtanh.pop %v960
    %963 = vrot.lane.b32.xlu0 %v961, 64
    %v964 = vpop.permute.xlu0 %963
    %v966 = vmul.f32 %v948, %v964
    %968 = vrot.lane.b32.xlu0 %v966, 32
    %v969 = vpop.permute.xlu0 %968
    %972 = vrot.lane.b32.xlu0 %v869, 64
    %v973 = vpop.permute.xlu0 %972
    %v975 = vsel %vm163, %v969, %v973
    %v977 = vsel %vm362, %v975, 0
    %979 = vmatprep.subr.mxu0 0.0
    %980 = vmatpush1.msra.mxu0 %v127
    %981 = vmatprep.subr.mxu0 0.0
    %982 = vmatpush1.msra.mxu0 %v128
    %983 = vmatprep.subr.mxu0 0.0
    %984 = vmatpush1.msra.mxu0 %v129
    %985 = vmatprep.subr.mxu0 0.0
    %986 = vmatpush1.msra.mxu0 %v130
    %987 = vmatprep.subr.mxu0 0.0
    %988 = vmatpush1.msra.mxu0 %v131
    %989 = vmatprep.subr.mxu0 0.0
    %990 = vmatpush1.msra.mxu0 %v132
    %991 = vmatprep.subr.mxu0 0.0
    %992 = vmatpush1.msra.mxu0 %v133
    %993 = vmatprep.subr.mxu0 0.0
    %994 = vmatpush1.msra.mxu0 %v134
    %995 = vmatprep.subr.mxu0 0.0
    %996 = vmatpush1.msra.mxu0 0.0
    %997 = vmatprep.subr.mxu0 0.0
    %998 = vmatpush1.msra.mxu0 0.0
    %999 = vmatprep.subr.mxu0 0.0
    %1000 = vmatpush1.msra.mxu0 0.0
    %1001 = vmatprep.subr.mxu0 0.0
    %1002 = vmatpush1.msra.mxu0 0.0
    %1003 = vmatprep.subr.mxu0 0.0
    %1004 = vmatpush1.msra.mxu0 0.0
    %1005 = vmatprep.subr.mxu0 0.0
    %1006 = vmatpush1.msra.mxu0 0.0
    %1007 = vmatprep.subr.mxu0 0.0
    %1008 = vmatpush1.msra.mxu0 0.0
    %1009 = vmatprep.subr.mxu0 0.0
    %1010 = vmatpush1.msra.mxu0 0.0
    %1011 = vmatprep.subr.mxu0 0.0
    %1012 = vmatpush1.msra.mxu0 0.0
    %1013 = vmatprep.subr.mxu0 0.0
    %1014 = vmatpush1.msra.mxu0 0.0
    %1015 = vmatprep.subr.mxu0 0.0
    %1016 = vmatpush1.msra.mxu0 0.0
    %1017 = vmatprep.subr.mxu0 0.0
    %1018 = vmatpush1.msra.mxu0 0.0
    %1019 = vmatprep.subr.mxu0 0.0
    %1020 = vmatpush1.msra.mxu0 0.0
    %1021 = vmatprep.subr.mxu0 0.0
    %1022 = vmatpush1.msra.mxu0 0.0
    %1023 = vmatprep.subr.mxu0 0.0
    %1024 = vmatpush1.msra.mxu0 0.0
    %1025 = vmatprep.subr.mxu0 0.0
    %1026 = vmatpush1.msra.mxu0 0.0
    %1027 = vmatprep.subr.mxu0 0.0
    %1028 = vmatpush1.msra.mxu0 0.0
    %1029 = vmatprep.subr.mxu0 0.0
    %1030 = vmatpush1.msra.mxu0 0.0
    %1031 = vmatprep.subr.mxu0 0.0
    %1032 = vmatpush1.msra.mxu0 0.0
    %1033 = vmatprep.subr.mxu0 0.0
    %1034 = vmatpush1.msra.mxu0 0.0
    %1035 = vmatprep.subr.mxu0 0.0
    %1036 = vmatpush1.msra.mxu0 0.0
    %1037 = vmatprep.subr.mxu0 0.0
    %1038 = vmatpush1.msra.mxu0 0.0
    %1039 = vmatprep.subr.mxu0 0.0
    %1040 = vmatpush1.msra.mxu0 0.0
    %1041 = vmatprep.subr.mxu0 0.0
    %1042 = vmatpush1.msra.mxu0 0.0
    %1043 = vmatprep.mubr.f32.mxu0 0.0
    %1044 = vmatmul.mubr.f32.gmra.mrb[0].mxu0 %v977
    %v1045 = vpop.f32.mrb[0].mxu0
    %v1046 = vadd.f32 %v140, %v1045
    %v1047 = vpop.f32.mrb[0].mxu0
    %1048 = vdwg.mxu0
    %v1049 = vxor.u32 %v1046, 2147483648
    %v1050 = vmul.f32 %v1049, 1.442695
    %v1051 = vpow.pop %v1050
    %v1052 = vadd.f32 %v1051, 1.0
    %v1053 = vrcp.pop %v1052
    %v1054 = vmul.f32 1.0, %v1053
    %v1055 = vtanh.pop %v1046
    %v1056 = vmul.f32 %v1054, %v863
    %1058 = vrot.lane.b32.xlu0 %v1055, 64
    %v1059 = vpop.permute.xlu0 %1058
    %v1061 = vmul.f32 %v1054, %v1059
    %1063 = vrot.lane.b32.xlu0 %v1061, 32
    %v1064 = vpop.permute.xlu0 %1063
    %v1066 = vadd.f32 %v1056, %v1064
    %v1067 = vtanh.pop %v1066
    %1069 = vrot.lane.b32.xlu0 %v1067, 64
    %v1070 = vpop.permute.xlu0 %1069
    %v1072 = vmul.f32 %v1054, %v1070
    %v1073 = vsel %vm163, %v969, 0
    %1075 = vmatprep.subr.mxu0 0.0
    %1076 = vmatpush1.msra.mxu0 %v123
    %1077 = vmatprep.subr.mxu0 0.0
    %1078 = vmatpush1.msra.mxu0 %v124
    %1079 = vmatprep.subr.mxu0 0.0
    %1080 = vmatpush1.msra.mxu0 %v125
    %1081 = vmatprep.subr.mxu0 0.0
    %1082 = vmatpush1.msra.mxu0 %v126
    %1083 = vmatprep.subr.mxu0 0.0
    %1084 = vmatpush1.msra.mxu0 0.0
    %1085 = vmatprep.subr.mxu0 0.0
    %1086 = vmatpush1.msra.mxu0 0.0
    %1087 = vmatprep.subr.mxu0 0.0
    %1088 = vmatpush1.msra.mxu0 0.0
    %1089 = vmatprep.subr.mxu0 0.0
    %1090 = vmatpush1.msra.mxu0 0.0
    %1091 = vmatprep.subr.mxu0 0.0
    %1092 = vmatpush1.msra.mxu0 0.0
    %1093 = vmatprep.subr.mxu0 0.0
    %1094 = vmatpush1.msra.mxu0 0.0
    %1095 = vmatprep.subr.mxu0 0.0
    %1096 = vmatpush1.msra.mxu0 0.0
    %1097 = vmatprep.subr.mxu0 0.0
    %1098 = vmatpush1.msra.mxu0 0.0
    %1099 = vmatprep.subr.mxu0 0.0
    %1100 = vmatpush1.msra.mxu0 0.0
    %1101 = vmatprep.subr.mxu0 0.0
    %1102 = vmatpush1.msra.mxu0 0.0
    %1103 = vmatprep.subr.mxu0 0.0
    %1104 = vmatpush1.msra.mxu0 0.0
    %1105 = vmatprep.subr.mxu0 0.0
    %1106 = vmatpush1.msra.mxu0 0.0
    %1107 = vmatprep.subr.mxu0 0.0
    %1108 = vmatpush1.msra.mxu0 0.0
    %1109 = vmatprep.subr.mxu0 0.0
    %1110 = vmatpush1.msra.mxu0 0.0
    %1111 = vmatprep.subr.mxu0 0.0
    %1112 = vmatpush1.msra.mxu0 0.0
    %1113 = vmatprep.subr.mxu0 0.0
    %1114 = vmatpush1.msra.mxu0 0.0
    %1115 = vmatprep.subr.mxu0 0.0
    %1116 = vmatpush1.msra.mxu0 0.0
    %1117 = vmatprep.subr.mxu0 0.0
    %1118 = vmatpush1.msra.mxu0 0.0
    %1119 = vmatprep.subr.mxu0 0.0
    %1120 = vmatpush1.msra.mxu0 0.0
    %1121 = vmatprep.subr.mxu0 0.0
    %1122 = vmatpush1.msra.mxu0 0.0
    %1123 = vmatprep.subr.mxu0 0.0
    %1124 = vmatpush1.msra.mxu0 0.0
    %1125 = vmatprep.subr.mxu0 0.0
    %1126 = vmatpush1.msra.mxu0 0.0
    %1127 = vmatprep.subr.mxu0 0.0
    %1128 = vmatpush1.msra.mxu0 0.0
    %1129 = vmatprep.subr.mxu0 0.0
    %1130 = vmatpush1.msra.mxu0 0.0
    %1131 = vmatprep.subr.mxu0 0.0
    %1132 = vmatpush1.msra.mxu0 0.0
    %1133 = vmatprep.subr.mxu0 0.0
    %1134 = vmatpush1.msra.mxu0 0.0
    %1135 = vmatprep.subr.mxu0 0.0
    %1136 = vmatpush1.msra.mxu0 0.0
    %1137 = vmatprep.subr.mxu0 0.0
    %1138 = vmatpush1.msra.mxu0 0.0
    %1139 = vmatprep.mubr.f32.mxu0 0.0
    %1140 = vmatmul.mubr.f32.gmra.mrb[0].mxu0 %v1073
    %v1141 = vpop.f32.mrb[0].mxu0
    %v1142 = vadd.f32 0.0, %v1141
    %v1143 = vpop.f32.mrb[0].mxu0
    %1144 = vdwg.mxu0
    %v1145 = vadd.f32 %v120, %v1142
    %v1146 = vxor.u32 %v1145, 2147483648
    %v1147 = vmul.f32 %v1146, 1.442695
    %v1148 = vpow.pop %v1147
    %v1149 = vadd.f32 %v1148, 1.0
    %v1150 = vrcp.pop %v1149
    %v1151 = vmul.f32 1.0, %v1150
    %v1152 = vtanh.pop %v1145
    %v1153 = vmul.f32 %v1151, %v960
    %1155 = vrot.lane.b32.xlu0 %v1152, 64
    %v1156 = vpop.permute.xlu0 %1155
    %v1158 = vmul.f32 %v1151, %v1156
    %1160 = vrot.lane.b32.xlu0 %v1158, 32
    %v1161 = vpop.permute.xlu0 %1160
    %v1163 = vadd.f32 %v1153, %v1161
    %v1164 = vtanh.pop %v1163
    %1166 = vrot.lane.b32.xlu0 %v1164, 64
    %v1167 = vpop.permute.xlu0 %1166
    %v1169 = vmul.f32 %v1151, %v1167
    %1171 = vrot.lane.b32.xlu0 %v1169, 32
    %v1172 = vpop.permute.xlu0 %1171
    %1175 = vrot.lane.b32.xlu0 %v1072, 64
    %v1176 = vpop.permute.xlu0 %1175
    %v1178 = vsel %vm163, %v1172, %v1176
    %v1180 = vsel %vm362, %v1178, 0
    %1182 = vmatprep.subr.mxu0 0.0
    %1183 = vmatpush1.msra.mxu0 %v127
    %1184 = vmatprep.subr.mxu0 0.0
    %1185 = vmatpush1.msra.mxu0 %v128
    %1186 = vmatprep.subr.mxu0 0.0
    %1187 = vmatpush1.msra.mxu0 %v129
    %1188 = vmatprep.subr.mxu0 0.0
    %1189 = vmatpush1.msra.mxu0 %v130
    %1190 = vmatprep.subr.mxu0 0.0
    %1191 = vmatpush1.msra.mxu0 %v131
    %1192 = vmatprep.subr.mxu0 0.0
    %1193 = vmatpush1.msra.mxu0 %v132
    %1194 = vmatprep.subr.mxu0 0.0
    %1195 = vmatpush1.msra.mxu0 %v133
    %1196 = vmatprep.subr.mxu0 0.0
    %1197 = vmatpush1.msra.mxu0 %v134
    %1198 = vmatprep.subr.mxu0 0.0
    %1199 = vmatpush1.msra.mxu0 0.0
    %1200 = vmatprep.subr.mxu0 0.0
    %1201 = vmatpush1.msra.mxu0 0.0
    %1202 = vmatprep.subr.mxu0 0.0
    %1203 = vmatpush1.msra.mxu0 0.0
    %1204 = vmatprep.subr.mxu0 0.0
    %1205 = vmatpush1.msra.mxu0 0.0
    %1206 = vmatprep.subr.mxu0 0.0
    %1207 = vmatpush1.msra.mxu0 0.0
    %1208 = vmatprep.subr.mxu0 0.0
    %1209 = vmatpush1.msra.mxu0 0.0
    %1210 = vmatprep.subr.mxu0 0.0
    %1211 = vmatpush1.msra.mxu0 0.0
    %1212 = vmatprep.subr.mxu0 0.0
    %1213 = vmatpush1.msra.mxu0 0.0
    %1214 = vmatprep.subr.mxu0 0.0
    %1215 = vmatpush1.msra.mxu0 0.0
    %1216 = vmatprep.subr.mxu0 0.0
    %1217 = vmatpush1.msra.mxu0 0.0
    %1218 = vmatprep.subr.mxu0 0.0
    %1219 = vmatpush1.msra.mxu0 0.0
    %1220 = vmatprep.subr.mxu0 0.0
    %1221 = vmatpush1.msra.mxu0 0.0
    %1222 = vmatprep.subr.mxu0 0.0
    %1223 = vmatpush1.msra.mxu0 0.0
    %1224 = vmatprep.subr.mxu0 0.0
    %1225 = vmatpush1.msra.mxu0 0.0
    %1226 = vmatprep.subr.mxu0 0.0
    %1227 = vmatpush1.msra.mxu0 0.0
    %1228 = vmatprep.subr.mxu0 0.0
    %1229 = vmatpush1.msra.mxu0 0.0
    %1230 = vmatprep.subr.mxu0 0.0
    %1231 = vmatpush1.msra.mxu0 0.0
    %1232 = vmatprep.subr.mxu0 0.0
    %1233 = vmatpush1.msra.mxu0 0.0
    %1234 = vmatprep.subr.mxu0 0.0
    %1235 = vmatpush1.msra.mxu0 0.0
    %1236 = vmatprep.subr.mxu0 0.0
    %1237 = vmatpush1.msra.mxu0 0.0
    %1238 = vmatprep.subr.mxu0 0.0
    %1239 = vmatpush1.msra.mxu0 0.0
    %1240 = vmatprep.subr.mxu0 0.0
    %1241 = vmatpush1.msra.mxu0 0.0
    %1242 = vmatprep.subr.mxu0 0.0
    %1243 = vmatpush1.msra.mxu0 0.0
    %1244 = vmatprep.subr.mxu0 0.0
    %1245 = vmatpush1.msra.mxu0 0.0
    %1246 = vmatprep.mubr.f32.mxu0 0.0
    %1247 = vmatmul.mubr.f32.gmra.mrb[0].mxu0 %v1180
    %v1248 = vpop.f32.mrb[0].mxu0
    %v1249 = vadd.f32 %v140, %v1248
    %v1250 = vpop.f32.mrb[0].mxu0
    %1251 = vdwg.mxu0
    %v1252 = vxor.u32 %v1249, 2147483648
    %v1253 = vmul.f32 %v1252, 1.442695
    %v1254 = vpow.pop %v1253
    %v1255 = vadd.f32 %v1254, 1.0
    %v1256 = vrcp.pop %v1255
    %v1257 = vmul.f32 1.0, %v1256
    %v1258 = vtanh.pop %v1249
    %v1259 = vmul.f32 %v1257, %v1066
    %1261 = vrot.lane.b32.xlu0 %v1258, 64
    %v1262 = vpop.permute.xlu0 %1261
    %v1264 = vmul.f32 %v1257, %v1262
    %1266 = vrot.lane.b32.xlu0 %v1264, 32
    %v1267 = vpop.permute.xlu0 %1266
    %v1269 = vadd.f32 %v1259, %v1267
    %v1270 = vtanh.pop %v1269
    %1272 = vrot.lane.b32.xlu0 %v1270, 64
    %v1273 = vpop.permute.xlu0 %1272
    %v1275 = vmul.f32 %v1257, %v1273
    %v1276 = vsel %vm163, %v1172, 0
    %1278 = vmatprep.subr.mxu0 0.0
    %1279 = vmatpush1.msra.mxu0 %v123
    %1280 = vmatprep.subr.mxu0 0.0
    %1281 = vmatpush1.msra.mxu0 %v124
    %1282 = vmatprep.subr.mxu0 0.0
    %1283 = vmatpush1.msra.mxu0 %v125
    %1284 = vmatprep.subr.mxu0 0.0
    %1285 = vmatpush1.msra.mxu0 %v126
    %1286 = vmatprep.subr.mxu0 0.0
    %1287 = vmatpush1.msra.mxu0 0.0
    %1288 = vmatprep.subr.mxu0 0.0
    %1289 = vmatpush1.msra.mxu0 0.0
    %1290 = vmatprep.subr.mxu0 0.0
    %1291 = vmatpush1.msra.mxu0 0.0
    %1292 = vmatprep.subr.mxu0 0.0
    %1293 = vmatpush1.msra.mxu0 0.0
    %1294 = vmatprep.subr.mxu0 0.0
    %1295 = vmatpush1.msra.mxu0 0.0
    %1296 = vmatprep.subr.mxu0 0.0
    %1297 = vmatpush1.msra.mxu0 0.0
    %1298 = vmatprep.subr.mxu0 0.0
    %1299 = vmatpush1.msra.mxu0 0.0
    %1300 = vmatprep.subr.mxu0 0.0
    %1301 = vmatpush1.msra.mxu0 0.0
    %1302 = vmatprep.subr.mxu0 0.0
    %1303 = vmatpush1.msra.mxu0 0.0
    %1304 = vmatprep.subr.mxu0 0.0
    %1305 = vmatpush1.msra.mxu0 0.0
    %1306 = vmatprep.subr.mxu0 0.0
    %1307 = vmatpush1.msra.mxu0 0.0
    %1308 = vmatprep.subr.mxu0 0.0
    %1309 = vmatpush1.msra.mxu0 0.0
    %1310 = vmatprep.subr.mxu0 0.0
    %1311 = vmatpush1.msra.mxu0 0.0
    %1312 = vmatprep.subr.mxu0 0.0
    %1313 = vmatpush1.msra.mxu0 0.0
    %1314 = vmatprep.subr.mxu0 0.0
    %1315 = vmatpush1.msra.mxu0 0.0
    %1316 = vmatprep.subr.mxu0 0.0
    %1317 = vmatpush1.msra.mxu0 0.0
    %1318 = vmatprep.subr.mxu0 0.0
    %1319 = vmatpush1.msra.mxu0 0.0
    %1320 = vmatprep.subr.mxu0 0.0
    %1321 = vmatpush1.msra.mxu0 0.0
    %1322 = vmatprep.subr.mxu0 0.0
    %1323 = vmatpush1.msra.mxu0 0.0
    %1324 = vmatprep.subr.mxu0 0.0
    %1325 = vmatpush1.msra.mxu0 0.0
    %1326 = vmatprep.subr.mxu0 0.0
    %1327 = vmatpush1.msra.mxu0 0.0
    %1328 = vmatprep.subr.mxu0 0.0
    %1329 = vmatpush1.msra.mxu0 0.0
    %1330 = vmatprep.subr.mxu0 0.0
    %1331 = vmatpush1.msra.mxu0 0.0
    %1332 = vmatprep.subr.mxu0 0.0
    %1333 = vmatpush1.msra.mxu0 0.0
    %1334 = vmatprep.subr.mxu0 0.0
    %1335 = vmatpush1.msra.mxu0 0.0
    %1336 = vmatprep.subr.mxu0 0.0
    %1337 = vmatpush1.msra.mxu0 0.0
    %1338 = vmatprep.subr.mxu0 0.0
    %1339 = vmatpush1.msra.mxu0 0.0
    %1340 = vmatprep.subr.mxu0 0.0
    %1341 = vmatpush1.msra.mxu0 0.0
    %1342 = vmatprep.mubr.f32.mxu0 0.0
    %1343 = vmatmul.mubr.f32.gmra.mrb[0].mxu0 %v1276
    %v1344 = vpop.f32.mrb[0].mxu0
    %v1345 = vadd.f32 0.0, %v1344
    %v1346 = vpop.f32.mrb[0].mxu0
    %1347 = vdwg.mxu0
    %v1348 = vadd.f32 %v121, %v1345
    %v1349 = vxor.u32 %v1348, 2147483648
    %v1350 = vmul.f32 %v1349, 1.442695
    %v1351 = vpow.pop %v1350
    %v1352 = vadd.f32 %v1351, 1.0
    %v1353 = vrcp.pop %v1352
    %v1354 = vmul.f32 1.0, %v1353
    %v1355 = vtanh.pop %v1348
    %v1356 = vmul.f32 %v1354, %v1163
    %1358 = vrot.lane.b32.xlu0 %v1355, 64
    %v1359 = vpop.permute.xlu0 %1358
    %v1361 = vmul.f32 %v1354, %v1359
    %1363 = vrot.lane.b32.xlu0 %v1361, 32
    %v1364 = vpop.permute.xlu0 %1363
    %v1366 = vadd.f32 %v1356, %v1364
    %v1367 = vtanh.pop %v1366
    %1369 = vrot.lane.b32.xlu0 %v1367, 64
    %v1370 = vpop.permute.xlu0 %1369
    %v1372 = vmul.f32 %v1354, %v1370
    %1374 = vrot.lane.b32.xlu0 %v1372, 32
    %v1375 = vpop.permute.xlu0 %1374
    %1378 = vrot.lane.b32.xlu0 %v1275, 64
    %v1379 = vpop.permute.xlu0 %1378
    %v1381 = vsel %vm163, %v1375, %v1379
    %v1383 = vsel %vm362, %v1381, 0
    %1385 = vmatprep.subr.mxu0 0.0
    %1386 = vmatpush1.msra.mxu0 %v127
    %1387 = vmatprep.subr.mxu0 0.0
    %1388 = vmatpush1.msra.mxu0 %v128
    %1389 = vmatprep.subr.mxu0 0.0
    %1390 = vmatpush1.msra.mxu0 %v129
    %1391 = vmatprep.subr.mxu0 0.0
    %1392 = vmatpush1.msra.mxu0 %v130
    %1393 = vmatprep.subr.mxu0 0.0
    %1394 = vmatpush1.msra.mxu0 %v131
    %1395 = vmatprep.subr.mxu0 0.0
    %1396 = vmatpush1.msra.mxu0 %v132
    %1397 = vmatprep.subr.mxu0 0.0
    %1398 = vmatpush1.msra.mxu0 %v133
    %1399 = vmatprep.subr.mxu0 0.0
    %1400 = vmatpush1.msra.mxu0 %v134
    %1401 = vmatprep.subr.mxu0 0.0
    %1402 = vmatpush1.msra.mxu0 0.0
    %1403 = vmatprep.subr.mxu0 0.0
    %1404 = vmatpush1.msra.mxu0 0.0
    %1405 = vmatprep.subr.mxu0 0.0
    %1406 = vmatpush1.msra.mxu0 0.0
    %1407 = vmatprep.subr.mxu0 0.0
    %1408 = vmatpush1.msra.mxu0 0.0
    %1409 = vmatprep.subr.mxu0 0.0
    %1410 = vmatpush1.msra.mxu0 0.0
    %1411 = vmatprep.subr.mxu0 0.0
    %1412 = vmatpush1.msra.mxu0 0.0
    %1413 = vmatprep.subr.mxu0 0.0
    %1414 = vmatpush1.msra.mxu0 0.0
    %1415 = vmatprep.subr.mxu0 0.0
    %1416 = vmatpush1.msra.mxu0 0.0
    %1417 = vmatprep.subr.mxu0 0.0
    %1418 = vmatpush1.msra.mxu0 0.0
    %1419 = vmatprep.subr.mxu0 0.0
    %1420 = vmatpush1.msra.mxu0 0.0
    %1421 = vmatprep.subr.mxu0 0.0
    %1422 = vmatpush1.msra.mxu0 0.0
    %1423 = vmatprep.subr.mxu0 0.0
    %1424 = vmatpush1.msra.mxu0 0.0
    %1425 = vmatprep.subr.mxu0 0.0
    %1426 = vmatpush1.msra.mxu0 0.0
    %1427 = vmatprep.subr.mxu0 0.0
    %1428 = vmatpush1.msra.mxu0 0.0
    %1429 = vmatprep.subr.mxu0 0.0
    %1430 = vmatpush1.msra.mxu0 0.0
    %1431 = vmatprep.subr.mxu0 0.0
    %1432 = vmatpush1.msra.mxu0 0.0
    %1433 = vmatprep.subr.mxu0 0.0
    %1434 = vmatpush1.msra.mxu0 0.0
    %1435 = vmatprep.subr.mxu0 0.0
    %1436 = vmatpush1.msra.mxu0 0.0
    %1437 = vmatprep.subr.mxu0 0.0
    %1438 = vmatpush1.msra.mxu0 0.0
    %1439 = vmatprep.subr.mxu0 0.0
    %1440 = vmatpush1.msra.mxu0 0.0
    %1441 = vmatprep.subr.mxu0 0.0
    %1442 = vmatpush1.msra.mxu0 0.0
    %1443 = vmatprep.subr.mxu0 0.0
    %1444 = vmatpush1.msra.mxu0 0.0
    %1445 = vmatprep.subr.mxu0 0.0
    %1446 = vmatpush1.msra.mxu0 0.0
    %1447 = vmatprep.subr.mxu0 0.0
    %1448 = vmatpush1.msra.mxu0 0.0
    %1449 = vmatprep.mubr.f32.mxu0 0.0
    %1450 = vmatmul.mubr.f32.gmra.mrb[0].mxu0 %v1383
    %v1451 = vpop.f32.mrb[0].mxu0
    %v1452 = vadd.f32 %v140, %v1451
    %v1453 = vpop.f32.mrb[0].mxu0
    %1454 = vdwg.mxu0
    %v1455 = vxor.u32 %v1452, 2147483648
    %v1456 = vmul.f32 %v1455, 1.442695
    %v1457 = vpow.pop %v1456
    %v1458 = vadd.f32 %v1457, 1.0
    %v1459 = vrcp.pop %v1458
    %v1460 = vmul.f32 1.0, %v1459
    %v1461 = vtanh.pop %v1452
    %v1462 = vmul.f32 %v1460, %v1269
    %1464 = vrot.lane.b32.xlu0 %v1461, 64
    %v1465 = vpop.permute.xlu0 %1464
    %v1467 = vmul.f32 %v1460, %v1465
    %1469 = vrot.lane.b32.xlu0 %v1467, 32
    %v1470 = vpop.permute.xlu0 %1469
    %v1472 = vadd.f32 %v1462, %v1470
    %v1473 = vtanh.pop %v1472
    %1475 = vrot.lane.b32.xlu0 %v1473, 64
    %v1476 = vpop.permute.xlu0 %1475
    %v1478 = vmul.f32 %v1460, %v1476
    %v1479 = vsel %vm163, %v1375, 0
    %1481 = vmatprep.subr.mxu0 0.0
    %1482 = vmatpush1.msra.mxu0 %v123
    %1483 = vmatprep.subr.mxu0 0.0
    %1484 = vmatpush1.msra.mxu0 %v124
    %1485 = vmatprep.subr.mxu0 0.0
    %1486 = vmatpush1.msra.mxu0 %v125
    %1487 = vmatprep.subr.mxu0 0.0
    %1488 = vmatpush1.msra.mxu0 %v126
    %1489 = vmatprep.subr.mxu0 0.0
    %1490 = vmatpush1.msra.mxu0 0.0
    %1491 = vmatprep.subr.mxu0 0.0
    %1492 = vmatpush1.msra.mxu0 0.0
    %1493 = vmatprep.subr.mxu0 0.0
    %1494 = vmatpush1.msra.mxu0 0.0
    %1495 = vmatprep.subr.mxu0 0.0
    %1496 = vmatpush1.msra.mxu0 0.0
    %1497 = vmatprep.subr.mxu0 0.0
    %1498 = vmatpush1.msra.mxu0 0.0
    %1499 = vmatprep.subr.mxu0 0.0
    %1500 = vmatpush1.msra.mxu0 0.0
    %1501 = vmatprep.subr.mxu0 0.0
    %1502 = vmatpush1.msra.mxu0 0.0
    %1503 = vmatprep.subr.mxu0 0.0
    %1504 = vmatpush1.msra.mxu0 0.0
    %1505 = vmatprep.subr.mxu0 0.0
    %1506 = vmatpush1.msra.mxu0 0.0
    %1507 = vmatprep.subr.mxu0 0.0
    %1508 = vmatpush1.msra.mxu0 0.0
    %1509 = vmatprep.subr.mxu0 0.0
    %1510 = vmatpush1.msra.mxu0 0.0
    %1511 = vmatprep.subr.mxu0 0.0
    %1512 = vmatpush1.msra.mxu0 0.0
    %1513 = vmatprep.subr.mxu0 0.0
    %1514 = vmatpush1.msra.mxu0 0.0
    %1515 = vmatprep.subr.mxu0 0.0
    %1516 = vmatpush1.msra.mxu0 0.0
    %1517 = vmatprep.subr.mxu0 0.0
    %1518 = vmatpush1.msra.mxu0 0.0
    %1519 = vmatprep.subr.mxu0 0.0
    %1520 = vmatpush1.msra.mxu0 0.0
    %1521 = vmatprep.subr.mxu0 0.0
    %1522 = vmatpush1.msra.mxu0 0.0
    %1523 = vmatprep.subr.mxu0 0.0
    %1524 = vmatpush1.msra.mxu0 0.0
    %1525 = vmatprep.subr.mxu0 0.0
    %1526 = vmatpush1.msra.mxu0 0.0
    %1527 = vmatprep.subr.mxu0 0.0
    %1528 = vmatpush1.msra.mxu0 0.0
    %1529 = vmatprep.subr.mxu0 0.0
    %1530 = vmatpush1.msra.mxu0 0.0
    %1531 = vmatprep.subr.mxu0 0.0
    %1532 = vmatpush1.msra.mxu0 0.0
    %1533 = vmatprep.subr.mxu0 0.0
    %1534 = vmatpush1.msra.mxu0 0.0
    %1535 = vmatprep.subr.mxu0 0.0
    %1536 = vmatpush1.msra.mxu0 0.0
    %1537 = vmatprep.subr.mxu0 0.0
    %1538 = vmatpush1.msra.mxu0 0.0
    %1539 = vmatprep.subr.mxu0 0.0
    %1540 = vmatpush1.msra.mxu0 0.0
    %1541 = vmatprep.subr.mxu0 0.0
    %1542 = vmatpush1.msra.mxu0 0.0
    %1543 = vmatprep.subr.mxu0 0.0
    %1544 = vmatpush1.msra.mxu0 0.0
    %1545 = vmatprep.mubr.f32.mxu0 0.0
    %1546 = vmatmul.mubr.f32.gmra.mrb[0].mxu0 %v1479
    %v1547 = vpop.f32.mrb[0].mxu0
    %v1548 = vadd.f32 0.0, %v1547
    %v1549 = vpop.f32.mrb[0].mxu0
    %1550 = vdwg.mxu0
    %v1551 = vadd.f32 %v122, %v1548
    %v1552 = vxor.u32 %v1551, 2147483648
    %v1553 = vmul.f32 %v1552, 1.442695
    %v1554 = vpow.pop %v1553
    %v1555 = vadd.f32 %v1554, 1.0
    %v1556 = vrcp.pop %v1555
    %v1557 = vmul.f32 1.0, %v1556
    %v1558 = vtanh.pop %v1551
    %v1559 = vmul.f32 %v1557, %v1366
    %1561 = vrot.lane.b32.xlu0 %v1558, 64
    %v1562 = vpop.permute.xlu0 %1561
    %v1564 = vmul.f32 %v1557, %v1562
    %1566 = vrot.lane.b32.xlu0 %v1564, 32
    %v1567 = vpop.permute.xlu0 %1566
    %v1569 = vadd.f32 %v1559, %v1567
    %v1570 = vtanh.pop %v1569
    %1572 = vrot.lane.b32.xlu0 %v1570, 64
    %v1573 = vpop.permute.xlu0 %1572
    %v1575 = vmul.f32 %v1557, %v1573
    %1577 = vrot.lane.b32.xlu0 %v1575, 32
    %v1578 = vpop.permute.xlu0 %1577
    %1581 = vrot.lane.b32.xlu0 %v1478, 64
    %v1582 = vpop.permute.xlu0 %1581
    %v1584 = vsel %vm163, %v1578, %v1582
    %v1586 = vsel %vm362, %v1584, 0
    %1588 = vmatprep.subr.mxu0 0.0
    %1589 = vmatpush1.msra.mxu0 %v127
    %1590 = vmatprep.subr.mxu0 0.0
    %1591 = vmatpush1.msra.mxu0 %v128
    %1592 = vmatprep.subr.mxu0 0.0
    %1593 = vmatpush1.msra.mxu0 %v129
    %1594 = vmatprep.subr.mxu0 0.0
    %1595 = vmatpush1.msra.mxu0 %v130
    %1596 = vmatprep.subr.mxu0 0.0
    %1597 = vmatpush1.msra.mxu0 %v131
    %1598 = vmatprep.subr.mxu0 0.0
    %1599 = vmatpush1.msra.mxu0 %v132
    %1600 = vmatprep.subr.mxu0 0.0
    %1601 = vmatpush1.msra.mxu0 %v133
    %1602 = vmatprep.subr.mxu0 0.0
    %1603 = vmatpush1.msra.mxu0 %v134
    %1604 = vmatprep.subr.mxu0 0.0
    %1605 = vmatpush1.msra.mxu0 0.0
    %1606 = vmatprep.subr.mxu0 0.0
    %1607 = vmatpush1.msra.mxu0 0.0
    %1608 = vmatprep.subr.mxu0 0.0
    %1609 = vmatpush1.msra.mxu0 0.0
    %1610 = vmatprep.subr.mxu0 0.0
    %1611 = vmatpush1.msra.mxu0 0.0
    %1612 = vmatprep.subr.mxu0 0.0
    %1613 = vmatpush1.msra.mxu0 0.0
    %1614 = vmatprep.subr.mxu0 0.0
    %1615 = vmatpush1.msra.mxu0 0.0
    %1616 = vmatprep.subr.mxu0 0.0
    %1617 = vmatpush1.msra.mxu0 0.0
    %1618 = vmatprep.subr.mxu0 0.0
    %1619 = vmatpush1.msra.mxu0 0.0
    %1620 = vmatprep.subr.mxu0 0.0
    %1621 = vmatpush1.msra.mxu0 0.0
    %1622 = vmatprep.subr.mxu0 0.0
    %1623 = vmatpush1.msra.mxu0 0.0
    %1624 = vmatprep.subr.mxu0 0.0
    %1625 = vmatpush1.msra.mxu0 0.0
    %1626 = vmatprep.subr.mxu0 0.0
    %1627 = vmatpush1.msra.mxu0 0.0
    %1628 = vmatprep.subr.mxu0 0.0
    %1629 = vmatpush1.msra.mxu0 0.0
    %1630 = vmatprep.subr.mxu0 0.0
    %1631 = vmatpush1.msra.mxu0 0.0
    %1632 = vmatprep.subr.mxu0 0.0
    %1633 = vmatpush1.msra.mxu0 0.0
    %1634 = vmatprep.subr.mxu0 0.0
    %1635 = vmatpush1.msra.mxu0 0.0
    %1636 = vmatprep.subr.mxu0 0.0
    %1637 = vmatpush1.msra.mxu0 0.0
    %1638 = vmatprep.subr.mxu0 0.0
    %1639 = vmatpush1.msra.mxu0 0.0
    %1640 = vmatprep.subr.mxu0 0.0
    %1641 = vmatpush1.msra.mxu0 0.0
    %1642 = vmatprep.subr.mxu0 0.0
    %1643 = vmatpush1.msra.mxu0 0.0
    %1644 = vmatprep.subr.mxu0 0.0
    %1645 = vmatpush1.msra.mxu0 0.0
    %1646 = vmatprep.subr.mxu0 0.0
    %1647 = vmatpush1.msra.mxu0 0.0
    %1648 = vmatprep.subr.mxu0 0.0
    %1649 = vmatpush1.msra.mxu0 0.0
    %1650 = vmatprep.subr.mxu0 0.0
    %1651 = vmatpush1.msra.mxu0 0.0
    %1652 = vmatprep.mubr.f32.mxu0 0.0
    %1653 = vmatmul.mubr.f32.gmra.mrb[0].mxu0 %v1586
    %v1654 = vpop.f32.mrb[0].mxu0
    %v1655 = vadd.f32 %v140, %v1654
    %v1656 = vpop.f32.mrb[0].mxu0
    %1657 = vdwg.mxu0
    %v1658 = vxor.u32 %v1655, 2147483648
    %v1659 = vmul.f32 %v1658, 1.442695
    %v1660 = vpow.pop %v1659
    %v1661 = vadd.f32 %v1660, 1.0
    %v1662 = vrcp.pop %v1661
    %v1663 = vmul.f32 1.0, %v1662
    %v1664 = vtanh.pop %v1655
    %v1665 = vmul.f32 %v1663, %v1472
    %1667 = vrot.lane.b32.xlu0 %v1664, 64
    %v1668 = vpop.permute.xlu0 %1667
    %v1670 = vmul.f32 %v1663, %v1668
    %1672 = vrot.lane.b32.xlu0 %v1670, 32
    %v1673 = vpop.permute.xlu0 %1672
    %v1675 = vadd.f32 %v1665, %v1673
    %v1676 = vtanh.pop %v1675
    %1678 = vrot.lane.b32.xlu0 %v1676, 64
    %v1679 = vpop.permute.xlu0 %1678
    %v1681 = vmul.f32 %v1663, %v1679
    %v1682 = vld [vmem:[%s6] sm:$0xff]
    %v1683 = vld [vmem:[%s6 + $0x8] sm:$0xff]
    %v1684 = vld [vmem:[%s6 + $0x10] sm:$0xff]
    %v1685 = vld [vmem:[%s6 + $0x18] sm:$0xff]
    %v1686 = vld [vmem:[#allocation2] sm:$0x1]
    %v1688 = vlaneseq
    %v1689 = vshrl.u32 %v1688, 7
    %v1690 = vsub.s32 0, %v1689
    %v1691 = vrot.slane %v1686, %v1690
    %1694 = vrot.lane.b32.xlu0 %v1681, 32
    %v1695 = vpop.permute.xlu0 %1694
    %v1696 = vsel %vm163, %v1695, 0
    %1698 = vmatprep.subr.mxu0 0.0
    %1699 = vmatpush1.msra.mxu0 %v1682
    %1700 = vmatprep.subr.mxu0 0.0
    %1701 = vmatpush1.msra.mxu0 %v1683
    %1702 = vmatprep.subr.mxu0 0.0
    %1703 = vmatpush1.msra.mxu0 %v1684
    %1704 = vmatprep.subr.mxu0 0.0
    %1705 = vmatpush1.msra.mxu0 %v1685
    %1706 = vmatprep.subr.mxu0 0.0
    %1707 = vmatpush1.msra.mxu0 0.0
    %1708 = vmatprep.subr.mxu0 0.0
    %1709 = vmatpush1.msra.mxu0 0.0
    %1710 = vmatprep.subr.mxu0 0.0
    %1711 = vmatpush1.msra.mxu0 0.0
    %1712 = vmatprep.subr.mxu0 0.0
    %1713 = vmatpush1.msra.mxu0 0.0
    %1714 = vmatprep.subr.mxu0 0.0
    %1715 = vmatpush1.msra.mxu0 0.0
    %1716 = vmatprep.subr.mxu0 0.0
    %1717 = vmatpush1.msra.mxu0 0.0
    %1718 = vmatprep.subr.mxu0 0.0
    %1719 = vmatpush1.msra.mxu0 0.0
    %1720 = vmatprep.subr.mxu0 0.0
    %1721 = vmatpush1.msra.mxu0 0.0
    %1722 = vmatprep.subr.mxu0 0.0
    %1723 = vmatpush1.msra.mxu0 0.0
    %1724 = vmatprep.subr.mxu0 0.0
    %1725 = vmatpush1.msra.mxu0 0.0
    %1726 = vmatprep.subr.mxu0 0.0
    %1727 = vmatpush1.msra.mxu0 0.0
    %1728 = vmatprep.subr.mxu0 0.0
    %1729 = vmatpush1.msra.mxu0 0.0
    %1730 = vmatprep.subr.mxu0 0.0
    %1731 = vmatpush1.msra.mxu0 0.0
    %1732 = vmatprep.subr.mxu0 0.0
    %1733 = vmatpush1.msra.mxu0 0.0
    %1734 = vmatprep.subr.mxu0 0.0
    %1735 = vmatpush1.msra.mxu0 0.0
    %1736 = vmatprep.subr.mxu0 0.0
    %1737 = vmatpush1.msra.mxu0 0.0
    %1738 = vmatprep.subr.mxu0 0.0
    %1739 = vmatpush1.msra.mxu0 0.0
    %1740 = vmatprep.subr.mxu0 0.0
    %1741 = vmatpush1.msra.mxu0 0.0
    %1742 = vmatprep.subr.mxu0 0.0
    %1743 = vmatpush1.msra.mxu0 0.0
    %1744 = vmatprep.subr.mxu0 0.0
    %1745 = vmatpush1.msra.mxu0 0.0
    %1746 = vmatprep.subr.mxu0 0.0
    %1747 = vmatpush1.msra.mxu0 0.0
    %1748 = vmatprep.subr.mxu0 0.0
    %1749 = vmatpush1.msra.mxu0 0.0
    %1750 = vmatprep.subr.mxu0 0.0
    %1751 = vmatpush1.msra.mxu0 0.0
    %1752 = vmatprep.subr.mxu0 0.0
    %1753 = vmatpush1.msra.mxu0 0.0
    %1754 = vmatprep.subr.mxu0 0.0
    %1755 = vmatpush1.msra.mxu0 0.0
    %1756 = vmatprep.subr.mxu0 0.0
    %1757 = vmatpush1.msra.mxu0 0.0
    %1758 = vmatprep.subr.mxu0 0.0
    %1759 = vmatpush1.msra.mxu0 0.0
    %1760 = vmatprep.subr.mxu0 0.0
    %1761 = vmatpush1.msra.mxu0 0.0
    %1762 = vmatprep.mubr.f32.mxu0 0.0
    %1763 = vmatmul.mubr.f32.gmra.mrb[0].mxu0 %v1696
    %v1764 = vpop.f32.mrb[0].mxu0
    %v1765 = vadd.f32 %v1691, %v1764
    %v1766 = vpop.f32.mrb[0].mxu0
    %1767 = vdwg.mxu0
    %vm1768 = vcmask 1024
    %1769 = vst.msk [vmem:[%s8] sm:$0x3] %vm1768, %v1765
    // Predicated region
    $region38: #{tpu_custom_call.1} parent=1 // pred_check
      _
    $region39: #{tpu_custom_call.1} parent=1 // pred_check_branch
      %1771 = sbr.rel (0) target = $region41
    $region40: #{tpu_custom_call.1} parent=1 // pred_region
      _
    $region41: #{tpu_custom_call.1} parent=1 // pred_fallthru
      _
    // Predicated region
    $region42: #{tpu_custom_call.1} parent=1 // pred_check
      _
    $region43: #{tpu_custom_call.1} parent=1 // pred_check_branch
      %1773 = sbr.rel (0) target = $region45
    $region44: #{tpu_custom_call.1} parent=1 // pred_region
      _
    $region45: #{tpu_custom_call.1} parent=1 // pred_fallthru
      _
    %1774 = vsyncpa [#allocation4], 1

</llo_original>
